<compile_context>
chip_gen: v6e
topology: v6e:2x2x1
jax: 0.10.0
libtpu: 0.0.40
codegen_flags: <defaults>
</compile_context>

<pallas_src>
import functools

import jax
import jax.numpy as jnp
from jax import lax
from jax.experimental import pallas as pl
from jax.experimental.pallas import tpu as pltpu


# ---------------------------------------------------------------------------
# Fused C3k2 kernel: one group of images per grid step.
# Activations are (C, S) f32: channels in sublanes, zero-padded flattened spatial
# (row stride `wp`, per-image zero lane tail) in lanes.
# ---------------------------------------------------------------------------
def _c3k2_fused_kernel(x_ref, mask_ref,
                       w1_ref, b1_ref,
                       wm1_ref, bm1_ref,
                       wm2_ref, bm2_ref,
                       w2_ref, b2_ref,
                       o_ref, *, wp, c):
    S = x_ref.shape[-1]
    x = x_ref[...]          # (C1, S)
    mask = mask_ref[...]    # (1, S): 1.0 at interior pixels, 0.0 at halo / lane tail

    def silu(a):
        # x * sigmoid(x); exp and approx reciprocal both run on the EUP slot.
        return a * pl.reciprocal(1.0 + jnp.exp(-a), approx=True)

    # 3x3 tap lane offsets, k = 3*dy + dx
    shifts = [(dy - 1) * wp + (dx - 1) for dy in range(3) for dx in range(3)]

    def im2col(inp):
        # tap_k[ci, i] = inp[ci, (i + d_k) mod S].  `inp` is masked (zero halo + zero
        # per-image lane tail), so circularly wrapped lanes either read zeros or only
        # land in halo/tail output lanes that are masked / cropped downstream.
        cols = [inp if d == 0 else pltpu.roll(inp, shift=(-d) % S, axis=1)
                for d in shifts]
        return jnp.concatenate(cols, axis=0)                    # (9*Cin, S)

    def matmul(w_ref, rhs, b_ref):
        return jnp.dot(w_ref[...], rhs, preferred_element_type=jnp.float32) + b_ref[...]

    # cv1 (1x1 Conv+BN+SiLU): single (2c, C1)@(C1, S) matmul, split by sublane slicing.
    t = silu(matmul(w1_ref, x, b1_ref))                          # (2c, S)
    y0 = t[:c]                                                   # (c,  S)
    y1 = mask * t[c:2 * c]                                       # (c,  S) masked: feeds 3x3 taps

    # Bottleneck (shortcut=True): two 3x3 Conv+BN+SiLU as single im2col matmuls.
    h = mask * silu(matmul(wm1_ref, im2col(y1), bm1_ref))        # (c_, S) masked: feeds 3x3 taps
    y2 = y1 + silu(matmul(wm2_ref, im2col(h), bm2_ref))          # (c,  S)

    # cv2 (1x1) over concat([y0, y1, y2]): one K=3c matmul, concat stays in registers.
    cat = jnp.concatenate([y0, y1, y2], axis=0)                  # (3c, S)
    out = silu(matmul(w2_ref, cat, b2_ref))                      # (C2, S)
    o_ref[...] = out.astype(o_ref.dtype)


# ---------------------------------------------------------------------------
# Host-side weight re-layout for the fused kernel (channels-first, im2col weights).
# ---------------------------------------------------------------------------
def _prep_inference_weights(params):
    c = params["c"]
    s0, s1 = params["split"]
    assert (s0, s1) == (c, c), "kernel is specialised to the unpruned (c, c) split"

    w1_hwio, b1 = params["cv1"]
    w1 = jnp.transpose(w1_hwio[0, 0], (1, 0))                    # (2c, C1)

    (bw1_hwio, bb1), (bw2_hwio, bb2) = params["m"][0]
    # im2col weights: (Cout, 9*Cin); column block k = tap (dy, dx), k = 3*dy + dx.
    wm1 = jnp.transpose(bw1_hwio, (3, 0, 1, 2)).reshape(bw1_hwio.shape[3], -1)
    wm2 = jnp.transpose(bw2_hwio, (3, 0, 1, 2)).reshape(bw2_hwio.shape[3], -1)

    w2_hwio, b2 = params["cv2"]
    w2 = jnp.transpose(w2_hwio[0, 0], (1, 0))                    # (C2, 3c)

    return (w1, b1.reshape(-1, 1),
            wm1, bb1.reshape(-1, 1),
            wm2, bb2.reshape(-1, 1),
            w2, b2.reshape(-1, 1))


# ---------------------------------------------------------------------------
# Forward: NCHW in -> single fused pallas_call -> NCHW out
# ---------------------------------------------------------------------------
def c3k2_infer_forward(x_nchw, params, images_per_step=None):
    B, C1, H, W = x_nchw.shape
    C2 = params["cv2"][1].shape[0]
    c = params["c"]
    pad = 1
    Hp, Wp = H + 2 * pad, W + 2 * pad
    n_pix = Hp * Wp
    S = ((n_pix + 127) // 128) * 128   # lane-dense flattened padded spatial (multiple of 128)
    # roll / lane-packing safety: per-image zero tail must cover the widest 3x3 tap shift.
    assert S - n_pix >= Wp + 1, "zero lane tail too short for rolled 3x3 taps"

    # Pack several images along lanes per grid step to amortise per-step overhead, but keep
    # at least 2 grid steps so a v7x megacore still shards the batch across both TensorCores.
    if images_per_step is None:
        images_per_step = B // 2 if (B >= 4 and B % 2 == 0) else 1
    assert B % images_per_step == 0
    G = B // images_per_step
    S_tot = images_per_step * S

    # One-time layout prep (tiny XLA glue at the kernel boundary; stays channels-first).
    xp = jnp.pad(x_nchw, ((0, 0), (0, 0), (pad, pad), (pad, pad)))
    x_flat = jnp.pad(xp.reshape(B, C1, n_pix), ((0, 0), (0, 0), (0, S - n_pix)))
    x_packed = (x_flat.reshape(G, images_per_step, C1, S)
                .transpose(0, 2, 1, 3).reshape(G, C1, S_tot))

    mask2d = jnp.zeros((Hp, Wp), jnp.float32).at[pad:pad + H, pad:pad + W].set(1.0)
    mask = jnp.pad(mask2d.reshape(1, n_pix), ((0, 0), (0, S - n_pix)))
    mask = jnp.tile(mask, (1, images_per_step))                  # (1, S_tot)

    weights = _prep_inference_weights(params)

    def rep(arr):   # full-array block, same block every grid step (weights / mask)
        zeros = (0,) * arr.ndim
        return pl.BlockSpec(arr.shape, lambda g, _z=zeros: _z)

    in_specs = ([pl.BlockSpec((pl.Squeezed(), C1, S_tot), lambda g: (g, 0, 0)),
                 rep(mask)]
                + [rep(w) for w in weights])

    kernel = functools.partial(_c3k2_fused_kernel, wp=Wp, c=c)
    out_packed = pl.pallas_call(
        kernel,
        out_shape=jax.ShapeDtypeStruct((G, C2, S_tot), x_nchw.dtype),
        grid=(G,),
        in_specs=in_specs,
        out_specs=pl.BlockSpec((pl.Squeezed(), C2, S_tot), lambda g: (g, 0, 0)),
        compiler_params=pltpu.CompilerParams(dimension_semantics=("parallel",)),
    )(x_packed, mask, *weights)

    # unpack lanes -> NCHW: drop lane tail + halo
    out_flat = (out_packed.reshape(G, C2, images_per_step, S)
                .transpose(0, 2, 1, 3).reshape(B, C2, S))
    out = out_flat[:, :, :n_pix].reshape(B, C2, Hp, Wp)[:, :, pad:pad + H, pad:pad + W]
    return out


# ---------------------------------------------------------------------------
# Deterministic parameter construction (Conv = conv2d(no bias) + BN + SiLU),
# BN folded into (weight, bias).  HWIO weights shared by kernel prep + reference.
# ---------------------------------------------------------------------------
def make_conv_params(key, cin, cout, k):
    k1, k2, k3, k4, k5 = jax.random.split(key, 5)
    w = jax.random.normal(k1, (cout, cin, k, k), jnp.float32) * (1.0 / (cin * k * k) ** 0.5)
    gamma = jax.random.uniform(k2, (cout,), jnp.float32, 0.5, 1.5)
    beta = jax.random.normal(k3, (cout,), jnp.float32) * 0.1
    mean = jax.random.normal(k4, (cout,), jnp.float32) * 0.1
    var = jax.random.uniform(k5, (cout,), jnp.float32, 0.5, 1.5)
    eps = 1e-3                                     # ultralytics Conv BN eps
    scale = gamma / jnp.sqrt(var + eps)
    w_fused = w * scale[:, None, None, None]       # fold BN scale into conv weight
    b_fused = beta - mean * scale                  # folded BN bias
    w_hwio = jnp.transpose(w_fused, (2, 3, 1, 0))  # (k, k, Cin, Cout)
    return w_hwio, b_fused


def init_c3k2_params(key, c1, c2, n=1, e=0.5):
    c = int(c2 * e)
    keys = jax.random.split(key, 2 + 2 * n)
    params = {
        "c": c,
        "split": (c, c),   # pruner-assigned (self.c1, self.c2); set to the unpruned split
        "cv1": make_conv_params(keys[0], c1, 2 * c, 1),
        "cv2": make_conv_params(keys[1], (2 + n) * c, c2, 1),
        "m": [],
    }
    for i in range(n):
        c_ = int(c * 0.5)  # Bottleneck hidden channels (e=0.5)
        b_cv1 = make_conv_params(keys[2 + 2 * i], c, c_, 3)
        b_cv2 = make_conv_params(keys[3 + 2 * i], c_, c, 3)
        params["m"].append((b_cv1, b_cv2))
    return params


# ---------------------------------------------------------------------------
# Pure-JAX reference (lax.conv) for correctness check
# ---------------------------------------------------------------------------
def _ref_conv_silu(x, w_hwio, bias, residual=None):
    y = lax.conv_general_dilated(x, w_hwio, (1, 1), "SAME",
                                 dimension_numbers=("NHWC", "HWIO", "NHWC"))
    y = y + bias
    y = y * jax.nn.sigmoid(y)
    if residual is not None:
        y = y + residual
    return y


def c3k2_infer_reference(x_nchw, params):
    x = jnp.transpose(x_nchw, (0, 2, 3, 1))
    t = _ref_conv_silu(x, *params["cv1"])
    s0, s1 = params["split"]
    y = [t[..., :s0], t[..., s0:s0 + s1]]
    for (b_cv1, b_cv2) in params["m"]:
        h = _ref_conv_silu(y[-1], *b_cv1)
        y.append(_ref_conv_silu(h, *b_cv2, residual=y[-1]))
    cat = jnp.concatenate(y, axis=-1)
    out = _ref_conv_silu(cat, *params["cv2"])
    return jnp.transpose(out, (0, 3, 1, 2))


if __name__ == "__main__":
    key = jax.random.PRNGKey(0)
    k_x, k_p = jax.random.split(key)

    B, C1, H, W = 2, 4, 16, 16
    C2 = 8
    x = jax.random.normal(k_x, (B, C1, H, W), jnp.float32)

    params = init_c3k2_params(k_p, C1, C2, n=1, e=0.5)

    out = jax.block_until_ready(c3k2_infer_forward(x, params))
    ref = jax.block_until_ready(c3k2_infer_reference(x, params))

    assert out.shape == (B, C2, H, W), out.shape
    max_err = float(jnp.max(jnp.abs(out - ref)))
    # Tolerance accounts for the EUP approximate reciprocal used inside SiLU
    # (pl.reciprocal(approx=True)); any layout / weight-mapping bug would show up
    # as O(0.1-1) errors, far above this threshold.
    assert jnp.allclose(out, ref, rtol=5e-3, atol=5e-3), max_err

    print("KERNEL_OK")
</pallas_src>

<mosaic_0001>
module attributes {stable_mosaic.version = 11 : i64} {
  func.func @_c3k2_fused_kernel(%arg0: i32, %arg1: memref<1x4x384xf32, #tpu.memory_space<vmem>>, %arg2: memref<1x384xf32, #tpu.memory_space<vmem>>, %arg3: memref<8x4xf32, #tpu.memory_space<vmem>>, %arg4: memref<8x1xf32, #tpu.memory_space<vmem>>, %arg5: memref<2x36xf32, #tpu.memory_space<vmem>>, %arg6: memref<2x1xf32, #tpu.memory_space<vmem>>, %arg7: memref<4x18xf32, #tpu.memory_space<vmem>>, %arg8: memref<4x1xf32, #tpu.memory_space<vmem>>, %arg9: memref<8x12xf32, #tpu.memory_space<vmem>>, %arg10: memref<8x1xf32, #tpu.memory_space<vmem>>, %arg11: memref<1x8x384xf32, #tpu.memory_space<vmem>>) attributes {dimension_semantics = [#tpu.dimension_semantics<parallel>], iteration_bounds = array<i64: 2>, scalar_prefetch = 0 : i64, scratch_operands = 0 : i64, tpu.core_type = #tpu.core_type<tc>, window_params = [{transform_indices = @transform_0, window_bounds = array<i64: 1, 4, 384>}, {pipeline_mode = #tpu.pipeline_mode<synchronous>, transform_indices = @transform_1, window_bounds = array<i64: 1, 384>}, {pipeline_mode = #tpu.pipeline_mode<synchronous>, transform_indices = @transform_2, window_bounds = array<i64: 8, 4>}, {pipeline_mode = #tpu.pipeline_mode<synchronous>, transform_indices = @transform_3, window_bounds = array<i64: 8, 1>}, {pipeline_mode = #tpu.pipeline_mode<synchronous>, transform_indices = @transform_4, window_bounds = array<i64: 2, 36>}, {pipeline_mode = #tpu.pipeline_mode<synchronous>, transform_indices = @transform_5, window_bounds = array<i64: 2, 1>}, {pipeline_mode = #tpu.pipeline_mode<synchronous>, transform_indices = @transform_6, window_bounds = array<i64: 4, 18>}, {pipeline_mode = #tpu.pipeline_mode<synchronous>, transform_indices = @transform_7, window_bounds = array<i64: 4, 1>}, {pipeline_mode = #tpu.pipeline_mode<synchronous>, transform_indices = @transform_8, window_bounds = array<i64: 8, 12>}, {pipeline_mode = #tpu.pipeline_mode<synchronous>, transform_indices = @transform_9, window_bounds = array<i64: 8, 1>}, {transform_indices = @transform_10, window_bounds = array<i64: 1, 8, 384>}]} {
    %c0 = arith.constant 0 : index
    %c0_0 = arith.constant 0 : index
    %c0_1 = arith.constant 0 : index
    %0 = vector.load %arg1[%c0, %c0_0, %c0_1] : memref<1x4x384xf32, #tpu.memory_space<vmem>>, vector<1x4x384xf32>
    %1 = vector.shape_cast %0 : vector<1x4x384xf32> to vector<4x384xf32>
    %c0_2 = arith.constant 0 : index
    %c0_3 = arith.constant 0 : index
    %2 = vector.load %arg2[%c0_2, %c0_3] : memref<1x384xf32, #tpu.memory_space<vmem>>, vector<1x384xf32>
    %c0_4 = arith.constant 0 : index
    %c0_5 = arith.constant 0 : index
    %3 = vector.load %arg3[%c0_4, %c0_5] : memref<8x4xf32, #tpu.memory_space<vmem>>, vector<8x4xf32>
    %cst = arith.constant dense<0.000000e+00> : vector<8x384xf32>
    %4 = tpu.matmul %3, %1, %cst {dimension_numbers = #tpu.dot_dimension_numbers<[1], [0], [0], [1], [0, 0, 1, 1], [], []>} : vector<8x4xf32>, vector<4x384xf32>, vector<8x384xf32> -> vector<8x384xf32>
    %c0_6 = arith.constant 0 : index
    %c0_7 = arith.constant 0 : index
    %5 = vector.load %arg4[%c0_6, %c0_7] : memref<8x1xf32, #tpu.memory_space<vmem>>, vector<8x1xf32>
    %6 = vector.broadcast %5 : vector<8x1xf32> to vector<8x384xf32>
    %7 = arith.addf %4, %6 : vector<8x384xf32>
    %cst_8 = arith.constant 0.000000e+00 : f32
    %8 = vector.broadcast %cst_8 : f32 to vector<8x384xf32>
    %9 = arith.subf %8, %7 : vector<8x384xf32>
    %10 = math.exp %9 : vector<8x384xf32>
    %cst_9 = arith.constant 1.000000e+00 : f32
    %11 = vector.broadcast %cst_9 : f32 to vector<8x384xf32>
    %12 = arith.addf %11, %10 : vector<8x384xf32>
    %13 = tpu.reciprocal %12 {approx = true} : vector<8x384xf32> -> vector<8x384xf32>
    %14 = arith.mulf %7, %13 : vector<8x384xf32>
    %15 = vector.extract_strided_slice %14 {offsets = [0, 0], sizes = [4, 384], strides = [1, 1]} : vector<8x384xf32> to vector<4x384xf32>
    %16 = vector.extract_strided_slice %14 {offsets = [4, 0], sizes = [4, 384], strides = [1, 1]} : vector<8x384xf32> to vector<4x384xf32>
    %17 = vector.broadcast %2 : vector<1x384xf32> to vector<4x384xf32>
    %18 = arith.mulf %17, %16 : vector<4x384xf32>
    %c19_i32 = arith.constant 19 : i32
    %19 = tpu.dynamic_rotate %18 by %c19_i32 dim 1 : vector<4x384xf32>, i32 -> vector<4x384xf32>
    %c18_i32 = arith.constant 18 : i32
    %20 = tpu.dynamic_rotate %18 by %c18_i32 dim 1 : vector<4x384xf32>, i32 -> vector<4x384xf32>
    %c17_i32 = arith.constant 17 : i32
    %21 = tpu.dynamic_rotate %18 by %c17_i32 dim 1 : vector<4x384xf32>, i32 -> vector<4x384xf32>
    %c1_i32 = arith.constant 1 : i32
    %22 = tpu.dynamic_rotate %18 by %c1_i32 dim 1 : vector<4x384xf32>, i32 -> vector<4x384xf32>
    %c383_i32 = arith.constant 383 : i32
    %23 = tpu.dynamic_rotate %18 by %c383_i32 dim 1 : vector<4x384xf32>, i32 -> vector<4x384xf32>
    %c367_i32 = arith.constant 367 : i32
    %24 = tpu.dynamic_rotate %18 by %c367_i32 dim 1 : vector<4x384xf32>, i32 -> vector<4x384xf32>
    %c366_i32 = arith.constant 366 : i32
    %25 = tpu.dynamic_rotate %18 by %c366_i32 dim 1 : vector<4x384xf32>, i32 -> vector<4x384xf32>
    %c365_i32 = arith.constant 365 : i32
    %26 = tpu.dynamic_rotate %18 by %c365_i32 dim 1 : vector<4x384xf32>, i32 -> vector<4x384xf32>
    %27 = tpu.concatenate %19, %20, %21, %22, %18, %23, %24, %25, %26 in 0 : vector<4x384xf32>, vector<4x384xf32>, vector<4x384xf32>, vector<4x384xf32>, vector<4x384xf32>, vector<4x384xf32>, vector<4x384xf32>, vector<4x384xf32>, vector<4x384xf32> -> vector<36x384xf32>
    %c0_10 = arith.constant 0 : index
    %c0_11 = arith.constant 0 : index
    %28 = vector.load %arg5[%c0_10, %c0_11] : memref<2x36xf32, #tpu.memory_space<vmem>>, vector<2x36xf32>
    %cst_12 = arith.constant dense<0.000000e+00> : vector<2x384xf32>
    %29 = tpu.matmul %28, %27, %cst_12 {dimension_numbers = #tpu.dot_dimension_numbers<[1], [0], [0], [1], [0, 0, 1, 1], [], []>} : vector<2x36xf32>, vector<36x384xf32>, vector<2x384xf32> -> vector<2x384xf32>
    %c0_13 = arith.constant 0 : index
    %c0_14 = arith.constant 0 : index
    %30 = vector.load %arg6[%c0_13, %c0_14] : memref<2x1xf32, #tpu.memory_space<vmem>>, vector<2x1xf32>
    %31 = vector.broadcast %30 : vector<2x1xf32> to vector<2x384xf32>
    %32 = arith.addf %29, %31 : vector<2x384xf32>
    %cst_15 = arith.constant 0.000000e+00 : f32
    %33 = vector.broadcast %cst_15 : f32 to vector<2x384xf32>
    %34 = arith.subf %33, %32 : vector<2x384xf32>
    %35 = math.exp %34 : vector<2x384xf32>
    %cst_16 = arith.constant 1.000000e+00 : f32
    %36 = vector.broadcast %cst_16 : f32 to vector<2x384xf32>
    %37 = arith.addf %36, %35 : vector<2x384xf32>
    %38 = tpu.reciprocal %37 {approx = true} : vector<2x384xf32> -> vector<2x384xf32>
    %39 = arith.mulf %32, %38 : vector<2x384xf32>
    %40 = vector.broadcast %2 : vector<1x384xf32> to vector<2x384xf32>
    %41 = arith.mulf %40, %39 : vector<2x384xf32>
    %c19_i32_17 = arith.constant 19 : i32
    %42 = tpu.dynamic_rotate %41 by %c19_i32_17 dim 1 : vector<2x384xf32>, i32 -> vector<2x384xf32>
    %c18_i32_18 = arith.constant 18 : i32
    %43 = tpu.dynamic_rotate %41 by %c18_i32_18 dim 1 : vector<2x384xf32>, i32 -> vector<2x384xf32>
    %c17_i32_19 = arith.constant 17 : i32
    %44 = tpu.dynamic_rotate %41 by %c17_i32_19 dim 1 : vector<2x384xf32>, i32 -> vector<2x384xf32>
    %c1_i32_20 = arith.constant 1 : i32
    %45 = tpu.dynamic_rotate %41 by %c1_i32_20 dim 1 : vector<2x384xf32>, i32 -> vector<2x384xf32>
    %c383_i32_21 = arith.constant 383 : i32
    %46 = tpu.dynamic_rotate %41 by %c383_i32_21 dim 1 : vector<2x384xf32>, i32 -> vector<2x384xf32>
    %c367_i32_22 = arith.constant 367 : i32
    %47 = tpu.dynamic_rotate %41 by %c367_i32_22 dim 1 : vector<2x384xf32>, i32 -> vector<2x384xf32>
    %c366_i32_23 = arith.constant 366 : i32
    %48 = tpu.dynamic_rotate %41 by %c366_i32_23 dim 1 : vector<2x384xf32>, i32 -> vector<2x384xf32>
    %c365_i32_24 = arith.constant 365 : i32
    %49 = tpu.dynamic_rotate %41 by %c365_i32_24 dim 1 : vector<2x384xf32>, i32 -> vector<2x384xf32>
    %50 = tpu.concatenate %42, %43, %44, %45, %41, %46, %47, %48, %49 in 0 : vector<2x384xf32>, vector<2x384xf32>, vector<2x384xf32>, vector<2x384xf32>, vector<2x384xf32>, vector<2x384xf32>, vector<2x384xf32>, vector<2x384xf32>, vector<2x384xf32> -> vector<18x384xf32>
    %c0_25 = arith.constant 0 : index
    %c0_26 = arith.constant 0 : index
    %51 = vector.load %arg7[%c0_25, %c0_26] : memref<4x18xf32, #tpu.memory_space<vmem>>, vector<4x18xf32>
    %cst_27 = arith.constant dense<0.000000e+00> : vector<4x384xf32>
    %52 = tpu.matmul %51, %50, %cst_27 {dimension_numbers = #tpu.dot_dimension_numbers<[1], [0], [0], [1], [0, 0, 1, 1], [], []>} : vector<4x18xf32>, vector<18x384xf32>, vector<4x384xf32> -> vector<4x384xf32>
    %c0_28 = arith.constant 0 : index
    %c0_29 = arith.constant 0 : index
    %53 = vector.load %arg8[%c0_28, %c0_29] : memref<4x1xf32, #tpu.memory_space<vmem>>, vector<4x1xf32>
    %54 = vector.broadcast %53 : vector<4x1xf32> to vector<4x384xf32>
    %55 = arith.addf %52, %54 : vector<4x384xf32>
    %cst_30 = arith.constant 0.000000e+00 : f32
    %56 = vector.broadcast %cst_30 : f32 to vector<4x384xf32>
    %57 = arith.subf %56, %55 : vector<4x384xf32>
    %58 = math.exp %57 : vector<4x384xf32>
    %cst_31 = arith.constant 1.000000e+00 : f32
    %59 = vector.broadcast %cst_31 : f32 to vector<4x384xf32>
    %60 = arith.addf %59, %58 : vector<4x384xf32>
    %61 = tpu.reciprocal %60 {approx = true} : vector<4x384xf32> -> vector<4x384xf32>
    %62 = arith.mulf %55, %61 : vector<4x384xf32>
    %63 = arith.addf %18, %62 : vector<4x384xf32>
    %64 = tpu.concatenate %15, %18, %63 in 0 : vector<4x384xf32>, vector<4x384xf32>, vector<4x384xf32> -> vector<12x384xf32>
    %c0_32 = arith.constant 0 : index
    %c0_33 = arith.constant 0 : index
    %65 = vector.load %arg9[%c0_32, %c0_33] : memref<8x12xf32, #tpu.memory_space<vmem>>, vector<8x12xf32>
    %cst_34 = arith.constant dense<0.000000e+00> : vector<8x384xf32>
    %66 = tpu.matmul %65, %64, %cst_34 {dimension_numbers = #tpu.dot_dimension_numbers<[1], [0], [0], [1], [0, 0, 1, 1], [], []>} : vector<8x12xf32>, vector<12x384xf32>, vector<8x384xf32> -> vector<8x384xf32>
    %c0_35 = arith.constant 0 : index
    %c0_36 = arith.constant 0 : index
    %67 = vector.load %arg10[%c0_35, %c0_36] : memref<8x1xf32, #tpu.memory_space<vmem>>, vector<8x1xf32>
    %68 = vector.broadcast %67 : vector<8x1xf32> to vector<8x384xf32>
    %69 = arith.addf %66, %68 : vector<8x384xf32>
    %cst_37 = arith.constant 0.000000e+00 : f32
    %70 = vector.broadcast %cst_37 : f32 to vector<8x384xf32>
    %71 = arith.subf %70, %69 : vector<8x384xf32>
    %72 = math.exp %71 : vector<8x384xf32>
    %cst_38 = arith.constant 1.000000e+00 : f32
    %73 = vector.broadcast %cst_38 : f32 to vector<8x384xf32>
    %74 = arith.addf %73, %72 : vector<8x384xf32>
    %75 = tpu.reciprocal %74 {approx = true} : vector<8x384xf32> -> vector<8x384xf32>
    %76 = arith.mulf %69, %75 : vector<8x384xf32>
    %c0_39 = arith.constant 0 : index
    %c0_40 = arith.constant 0 : index
    %c0_41 = arith.constant 0 : index
    %77 = vector.load %arg11[%c0_39, %c0_40, %c0_41] : memref<1x8x384xf32, #tpu.memory_space<vmem>>, vector<1x8x384xf32>
    %78 = vector.shape_cast %77 : vector<1x8x384xf32> to vector<8x384xf32>
    %79 = vector.shape_cast %76 : vector<8x384xf32> to vector<1x8x384xf32>
    tpu.vector_store %arg11[%c0_39, %c0_40, %c0_41], %79 {strides = array<i32>} : memref<1x8x384xf32, #tpu.memory_space<vmem>>, vector<1x8x384xf32>,
    return
  }
  func.func @transform_0(%arg0: i32) -> (i32, i32, i32) {
    %c0_i32 = arith.constant 0 : i32
    %c0_i32_0 = arith.constant 0 : i32
    %c0_i32_1 = arith.constant 0 : i32
    return %arg0, %c0_i32, %c0_i32_0 : i32, i32, i32
  }
  func.func @transform_1(%arg0: i32) -> (i32, i32) {
    %c0_i32 = arith.constant 0 : i32
    %c0_i32_0 = arith.constant 0 : i32
    %c0_i32_1 = arith.constant 0 : i32
    return %c0_i32, %c0_i32_0 : i32, i32
  }
  func.func @transform_2(%arg0: i32) -> (i32, i32) {
    %c0_i32 = arith.constant 0 : i32
    %c0_i32_0 = arith.constant 0 : i32
    %c0_i32_1 = arith.constant 0 : i32
    return %c0_i32, %c0_i32_0 : i32, i32
  }
  func.func @transform_3(%arg0: i32) -> (i32, i32) {
    %c0_i32 = arith.constant 0 : i32
    %c0_i32_0 = arith.constant 0 : i32
    %c0_i32_1 = arith.constant 0 : i32
    return %c0_i32, %c0_i32_0 : i32, i32
  }
  func.func @transform_4(%arg0: i32) -> (i32, i32) {
    %c0_i32 = arith.constant 0 : i32
    %c0_i32_0 = arith.constant 0 : i32
    %c0_i32_1 = arith.constant 0 : i32
    return %c0_i32, %c0_i32_0 : i32, i32
  }
  func.func @transform_5(%arg0: i32) -> (i32, i32) {
    %c0_i32 = arith.constant 0 : i32
    %c0_i32_0 = arith.constant 0 : i32
    %c0_i32_1 = arith.constant 0 : i32
    return %c0_i32, %c0_i32_0 : i32, i32
  }
  func.func @transform_6(%arg0: i32) -> (i32, i32) {
    %c0_i32 = arith.constant 0 : i32
    %c0_i32_0 = arith.constant 0 : i32
    %c0_i32_1 = arith.constant 0 : i32
    return %c0_i32, %c0_i32_0 : i32, i32
  }
  func.func @transform_7(%arg0: i32) -> (i32, i32) {
    %c0_i32 = arith.constant 0 : i32
    %c0_i32_0 = arith.constant 0 : i32
    %c0_i32_1 = arith.constant 0 : i32
    return %c0_i32, %c0_i32_0 : i32, i32
  }
  func.func @transform_8(%arg0: i32) -> (i32, i32) {
    %c0_i32 = arith.constant 0 : i32
    %c0_i32_0 = arith.constant 0 : i32
    %c0_i32_1 = arith.constant 0 : i32
    return %c0_i32, %c0_i32_0 : i32, i32
  }
  func.func @transform_9(%arg0: i32) -> (i32, i32) {
    %c0_i32 = arith.constant 0 : i32
    %c0_i32_0 = arith.constant 0 : i32
    %c0_i32_1 = arith.constant 0 : i32
    return %c0_i32, %c0_i32_0 : i32, i32
  }
  func.func @transform_10(%arg0: i32) -> (i32, i32, i32) {
    %c0_i32 = arith.constant 0 : i32
    %c0_i32_0 = arith.constant 0 : i32
    %c0_i32_1 = arith.constant 0 : i32
    return %arg0, %c0_i32, %c0_i32_0 : i32, i32, i32
  }
}

</mosaic_0001>

<llo_original>
// kernel: tpu_custom_call.1
$region0: #{tpu_custom_call.1}
  #allocation0 [shape = 'u32[]', space=smem, size = 0x4, offset = 0x4, fixed_abs, tag = 'smem constant byte address 0x4 - core index']
  #allocation1 [shape = 'u32[144,128]{1,0:T(1,128)}', space=vmem, size = 0x12000, scoped, tag = 'internal scratch']
  %s0 = inlined_call_operand.vmem [shape: f32[2,4,384], index: 0, kind: input, shape index: {}]
  %s1 = inlined_call_operand.hbm [shape: f32[1,384], index: 1, kind: input, shape index: {}]
  %s2 = inlined_call_operand.vmem [shape: f32[8,4], index: 2, kind: input, shape index: {}]
  %s3 = inlined_call_operand.vmem [shape: f32[8,1], index: 3, kind: input, shape index: {}]
  %s4 = inlined_call_operand.vmem [shape: f32[2,36], index: 4, kind: input, shape index: {}]
  %s5 = inlined_call_operand.vmem [shape: f32[2,1], index: 5, kind: input, shape index: {}]
  %s6 = inlined_call_operand.vmem [shape: f32[4,18], index: 6, kind: input, shape index: {}]
  %s7 = inlined_call_operand.vmem [shape: f32[4,1], index: 7, kind: input, shape index: {}]
  %s8 = inlined_call_operand.vmem [shape: f32[8,12], index: 8, kind: input, shape index: {}]
  %s9 = inlined_call_operand.vmem [shape: f32[8,1], index: 9, kind: input, shape index: {}]
  %s10 = inlined_call_operand.hbm [shape: f32[2,8,384], index: 10, kind: output, shape index: {}]
  %s11 = sld [smem:[#allocation0]]
  $region77: #{tpu_custom_call.1} parent=0
    _
  %s13 = ssub.s32 1, %s11
  %s14 = scalar_select 0, %s13, %s11
  $region1: #{tpu_custom_call.1} parent=0
    #allocation2 [shape = 'u8[1536]{0}', space=vmem, size = 0x800, scoped, tag = 'input window, operand 1, single buffered']
    #allocation3 [shape = 's32[2]{0}', space=sflag, size = 0x8, scoped, tag = 'scoped memory for tpu_custom_call.1']
    #allocation4 [shape = 's32[2]{0}', space=sflag, size = 0x8, scoped, tag = 'scoped memory for tpu_custom_call.1']
    #allocation5 [shape = 'u8[24576]{0}', space=vmem, size = 0x6000, scoped, tag = 'output window, operand 0']
    %15 = vsyncpa [#allocation3], 0
    %16 = vsyncpa [#allocation4], 0
    %s17 = scalar_lea.sflag [#allocation4], 1
    %18 = vsyncpa %s17, 0
    loop: start=0, step=1, limit=4
    $region2: #{tpu_custom_call.1} parent=1 // loop_pre_header
      _
    $region3: #{tpu_custom_call.1} parent=1 // loop_header
      %s20 = sphi 0, %s24
      %p21 = scmp.ge.s32.totalorder %s20, 4
      %s30 = sphi 0, %s32
      %s33 = sphi 0, %s30
      %s34 = sphi 0, %s33
      %s50 = sphi 0, %s34
      %s54 = sphi 0, %s54
      %s56 = sphi 0, %s54
      %s57 = sphi 0, %s56
      %s71 = sphi 0, %s57
      %s75 = sphi 0, %s75
      %s77 = sphi 0, %s75
      %s78 = sphi 0, %s77
      %s92 = sphi 0, %s78
      %s96 = sphi 0, %s96
      %s98 = sphi 0, %s96
      %s99 = sphi 0, %s98
      %s113 = sphi 0, %s99
      %s117 = sphi 0, %s117
      %s119 = sphi 0, %s117
      %s120 = sphi 0, %s119
      %s134 = sphi 0, %s120
      %s138 = sphi 0, %s138
      %s140 = sphi 0, %s138
      %s141 = sphi 0, %s140
      %s155 = sphi 0, %s141
      %s159 = sphi 0, %s159
      %s161 = sphi 0, %s159
      %s162 = sphi 0, %s161
      %s176 = sphi 0, %s162
      %s180 = sphi 0, %s180
      %s182 = sphi 0, %s180
      %s183 = sphi 0, %s182
      %s197 = sphi 0, %s183
      %s201 = sphi 0, %s201
      %s203 = sphi 0, %s201
      %s204 = sphi 0, %s203
      %s218 = sphi 0, %s204
      %s222 = sphi 0, %s222
      %s224 = sphi 0, %s222
      %s225 = sphi 0, %s224
      %s239 = sphi 0, %s225
      %s245 = sphi 0, %s247
      %s248 = sphi 0, %s245
      %s249 = sphi 0, %s248
      %s265 = sphi 0, %s249
    $region4: #{tpu_custom_call.1} parent=1 // loop_header_branch
      %23 = sbr.rel (%p21) target = $region8
    $region5: #{tpu_custom_call.1} parent=1 // loop_body
      %s25 = ssub.s32 %s20, 1
      %s26 = ssub.s32 %s20, 2
      %s27 = sadd.s32 %s20, 1
      %s28 = ssub.s32 %s20, %s27
      %p29 = scmp.eq.s32.totalorder %s28, 0
      %s31 = sadd.s32 %s30, 1
      %s32 = scalar_select %p29, %s30, %s31
      %p35 = pneg %p29
      %p36 = scmp.eq.s32.totalorder %s20, 1
      %p37 = por %p35, %p36
      %p38 = scmp.ne.s32.totalorder %s30, %s33
      %p39 = scmp.eq.s32.totalorder %s20, 0
      %p40 = por %p38, %p39
      %p41 = scmp.ne.s32.totalorder %s30, %s33
      %p42 = scmp.eq.s32.totalorder %s25, 1
      %p43 = por %p41, %p42
      %p44 = scmp.ne.s32.totalorder %s33, %s34
      %p45 = scmp.eq.s32.totalorder %s25, 0
      %p46 = por %p44, %p45
      %p47 = scmp.ne.s32.totalorder %s33, %s34
      %p48 = scmp.eq.s32.totalorder %s26, 1
      %p49 = por %p47, %p48
      %p51 = scmp.ne.s32.totalorder %s34, %s50
      %p52 = scmp.eq.s32.totalorder %s26, 0
      %p53 = por %p51, %p52
      %s55 = sadd.s32 %s54, 1
      %p58 = scmp.eq.s32.totalorder %s20, 1
      %p59 = scmp.ne.s32.totalorder %s54, %s56
      %p60 = scmp.eq.s32.totalorder %s20, 0
      %p61 = por %p59, %p60
      %p62 = scmp.ne.s32.totalorder %s54, %s56
      %p63 = scmp.eq.s32.totalorder %s25, 1
      %p64 = por %p62, %p63
      %p65 = scmp.ne.s32.totalorder %s56, %s57
      %p66 = scmp.eq.s32.totalorder %s25, 0
      %p67 = por %p65, %p66
      %p68 = scmp.ne.s32.totalorder %s56, %s57
      %p69 = scmp.eq.s32.totalorder %s26, 1
      %p70 = por %p68, %p69
      %p72 = scmp.ne.s32.totalorder %s57, %s71
      %p73 = scmp.eq.s32.totalorder %s26, 0
      %p74 = por %p72, %p73
      %s76 = sadd.s32 %s75, 1
      %p79 = scmp.eq.s32.totalorder %s20, 1
      %p80 = scmp.ne.s32.totalorder %s75, %s77
      %p81 = scmp.eq.s32.totalorder %s20, 0
      %p82 = por %p80, %p81
      %p83 = scmp.ne.s32.totalorder %s75, %s77
      %p84 = scmp.eq.s32.totalorder %s25, 1
      %p85 = por %p83, %p84
      %p86 = scmp.ne.s32.totalorder %s77, %s78
      %p87 = scmp.eq.s32.totalorder %s25, 0
      %p88 = por %p86, %p87
      %p89 = scmp.ne.s32.totalorder %s77, %s78
      %p90 = scmp.eq.s32.totalorder %s26, 1
      %p91 = por %p89, %p90
      %p93 = scmp.ne.s32.totalorder %s78, %s92
      %p94 = scmp.eq.s32.totalorder %s26, 0
      %p95 = por %p93, %p94
      %s97 = sadd.s32 %s96, 1
      %p100 = scmp.eq.s32.totalorder %s20, 1
      %p101 = scmp.ne.s32.totalorder %s96, %s98
      %p102 = scmp.eq.s32.totalorder %s20, 0
      %p103 = por %p101, %p102
      %p104 = scmp.ne.s32.totalorder %s96, %s98
      %p105 = scmp.eq.s32.totalorder %s25, 1
      %p106 = por %p104, %p105
      %p107 = scmp.ne.s32.totalorder %s98, %s99
      %p108 = scmp.eq.s32.totalorder %s25, 0
      %p109 = por %p107, %p108
      %p110 = scmp.ne.s32.totalorder %s98, %s99
      %p111 = scmp.eq.s32.totalorder %s26, 1
      %p112 = por %p110, %p111
      %p114 = scmp.ne.s32.totalorder %s99, %s113
      %p115 = scmp.eq.s32.totalorder %s26, 0
      %p116 = por %p114, %p115
      %s118 = sadd.s32 %s117, 1
      %p121 = scmp.eq.s32.totalorder %s20, 1
      %p122 = scmp.ne.s32.totalorder %s117, %s119
      %p123 = scmp.eq.s32.totalorder %s20, 0
      %p124 = por %p122, %p123
      %p125 = scmp.ne.s32.totalorder %s117, %s119
      %p126 = scmp.eq.s32.totalorder %s25, 1
      %p127 = por %p125, %p126
      %p128 = scmp.ne.s32.totalorder %s119, %s120
      %p129 = scmp.eq.s32.totalorder %s25, 0
      %p130 = por %p128, %p129
      %p131 = scmp.ne.s32.totalorder %s119, %s120
      %p132 = scmp.eq.s32.totalorder %s26, 1
      %p133 = por %p131, %p132
      %p135 = scmp.ne.s32.totalorder %s120, %s134
      %p136 = scmp.eq.s32.totalorder %s26, 0
      %p137 = por %p135, %p136
      %s139 = sadd.s32 %s138, 1
      %p142 = scmp.eq.s32.totalorder %s20, 1
      %p143 = scmp.ne.s32.totalorder %s138, %s140
      %p144 = scmp.eq.s32.totalorder %s20, 0
      %p145 = por %p143, %p144
      %p146 = scmp.ne.s32.totalorder %s138, %s140
      %p147 = scmp.eq.s32.totalorder %s25, 1
      %p148 = por %p146, %p147
      %p149 = scmp.ne.s32.totalorder %s140, %s141
      %p150 = scmp.eq.s32.totalorder %s25, 0
      %p151 = por %p149, %p150
      %p152 = scmp.ne.s32.totalorder %s140, %s141
      %p153 = scmp.eq.s32.totalorder %s26, 1
      %p154 = por %p152, %p153
      %p156 = scmp.ne.s32.totalorder %s141, %s155
      %p157 = scmp.eq.s32.totalorder %s26, 0
      %p158 = por %p156, %p157
      %s160 = sadd.s32 %s159, 1
      %p163 = scmp.eq.s32.totalorder %s20, 1
      %p164 = scmp.ne.s32.totalorder %s159, %s161
      %p165 = scmp.eq.s32.totalorder %s20, 0
      %p166 = por %p164, %p165
      %p167 = scmp.ne.s32.totalorder %s159, %s161
      %p168 = scmp.eq.s32.totalorder %s25, 1
      %p169 = por %p167, %p168
      %p170 = scmp.ne.s32.totalorder %s161, %s162
      %p171 = scmp.eq.s32.totalorder %s25, 0
      %p172 = por %p170, %p171
      %p173 = scmp.ne.s32.totalorder %s161, %s162
      %p174 = scmp.eq.s32.totalorder %s26, 1
      %p175 = por %p173, %p174
      %p177 = scmp.ne.s32.totalorder %s162, %s176
      %p178 = scmp.eq.s32.totalorder %s26, 0
      %p179 = por %p177, %p178
      %s181 = sadd.s32 %s180, 1
      %p184 = scmp.eq.s32.totalorder %s20, 1
      %p185 = scmp.ne.s32.totalorder %s180, %s182
      %p186 = scmp.eq.s32.totalorder %s20, 0
      %p187 = por %p185, %p186
      %p188 = scmp.ne.s32.totalorder %s180, %s182
      %p189 = scmp.eq.s32.totalorder %s25, 1
      %p190 = por %p188, %p189
      %p191 = scmp.ne.s32.totalorder %s182, %s183
      %p192 = scmp.eq.s32.totalorder %s25, 0
      %p193 = por %p191, %p192
      %p194 = scmp.ne.s32.totalorder %s182, %s183
      %p195 = scmp.eq.s32.totalorder %s26, 1
      %p196 = por %p194, %p195
      %p198 = scmp.ne.s32.totalorder %s183, %s197
      %p199 = scmp.eq.s32.totalorder %s26, 0
      %p200 = por %p198, %p199
      %s202 = sadd.s32 %s201, 1
      %p205 = scmp.eq.s32.totalorder %s20, 1
      %p206 = scmp.ne.s32.totalorder %s201, %s203
      %p207 = scmp.eq.s32.totalorder %s20, 0
      %p208 = por %p206, %p207
      %p209 = scmp.ne.s32.totalorder %s201, %s203
      %p210 = scmp.eq.s32.totalorder %s25, 1
      %p211 = por %p209, %p210
      %p212 = scmp.ne.s32.totalorder %s203, %s204
      %p213 = scmp.eq.s32.totalorder %s25, 0
      %p214 = por %p212, %p213
      %p215 = scmp.ne.s32.totalorder %s203, %s204
      %p216 = scmp.eq.s32.totalorder %s26, 1
      %p217 = por %p215, %p216
      %p219 = scmp.ne.s32.totalorder %s204, %s218
      %p220 = scmp.eq.s32.totalorder %s26, 0
      %p221 = por %p219, %p220
      %s223 = sadd.s32 %s222, 1
      %p226 = scmp.eq.s32.totalorder %s20, 1
      %p227 = scmp.ne.s32.totalorder %s222, %s224
      %p228 = scmp.eq.s32.totalorder %s20, 0
      %p229 = por %p227, %p228
      %p230 = scmp.ne.s32.totalorder %s222, %s224
      %p231 = scmp.eq.s32.totalorder %s25, 1
      %p232 = por %p230, %p231
      %p233 = scmp.ne.s32.totalorder %s224, %s225
      %p234 = scmp.eq.s32.totalorder %s25, 0
      %p235 = por %p233, %p234
      %p236 = scmp.ne.s32.totalorder %s224, %s225
      %p237 = scmp.eq.s32.totalorder %s26, 1
      %p238 = por %p236, %p237
      %p240 = scmp.ne.s32.totalorder %s225, %s239
      %p241 = scmp.eq.s32.totalorder %s26, 0
      %p242 = por %p240, %p241
      %s243 = ssub.s32 %s20, %s27
      %p244 = scmp.eq.s32.totalorder %s243, 0
      %s246 = sadd.s32 %s245, 1
      %s247 = scalar_select %p244, %s245, %s246
      %p250 = pneg %p244
      %p251 = scmp.eq.s32.totalorder %s20, 1
      %p252 = por %p250, %p251
      %p253 = scmp.ne.s32.totalorder %s245, %s248
      %p254 = scmp.eq.s32.totalorder %s20, 0
      %p255 = por %p253, %p254
      %p256 = scmp.ne.s32.totalorder %s245, %s248
      %p257 = scmp.eq.s32.totalorder %s25, 1
      %p258 = por %p256, %p257
      %p259 = scmp.ne.s32.totalorder %s248, %s249
      %p260 = scmp.eq.s32.totalorder %s25, 0
      %p261 = por %p259, %p260
      %p262 = scmp.ne.s32.totalorder %s248, %s249
      %p263 = scmp.eq.s32.totalorder %s26, 1
      %p264 = por %p262, %p263
      %p266 = scmp.ne.s32.totalorder %s249, %s265
      %p267 = scmp.eq.s32.totalorder %s26, 0
      %p268 = por %p266, %p267
      %p269 = scmp.le.s32.totalorder 1, %s20
      %p270 = scmp.lt.s32.totalorder %s20, 3
      %p271 = pnand %p269, %p270
      %p272 = pneg %p271
      // Predicated region
      $region9: #{tpu_custom_call.1} parent=5 // pred_check
        _
      $region10: #{tpu_custom_call.1} parent=5 // pred_check_branch
        %274 = sbr.rel (%p271) target = $region12
      $region11: #{tpu_custom_call.1} parent=5 // pred_region
        %s275 = ssub.s32 %s20, 1
        // Predicated region
        $region13: #{tpu_custom_call.1} parent=11 // pred_check
          %p276 = pneg %p67
        $region14: #{tpu_custom_call.1} parent=11 // pred_check_branch
          %278 = sbr.rel (%p276) target = $region16
        $region15: #{tpu_custom_call.1} parent=11 // pred_region
          %s280 = ssub.s32 48, 48
          %281 = vsyncadd [#allocation3], %s280
          %s283 = sshll.u32 [#allocation2], 4
          %s284 = int_to_ptr.vmem [resolvable:$true] %s283
          %286 = dma.hbm_to_vmem [thread:$0]  %s1, 48, %s284, [#allocation3]
        $region16: #{tpu_custom_call.1} parent=11 // pred_fallthru
          _
        // Predicated region
        $region17: #{tpu_custom_call.1} parent=11 // pred_check
          %p287 = pneg %p88
        $region18: #{tpu_custom_call.1} parent=11 // pred_check_branch
          %289 = sbr.rel (%p287) target = $region20
        $region19: #{tpu_custom_call.1} parent=11 // pred_region
          _
        $region20: #{tpu_custom_call.1} parent=11 // pred_fallthru
          _
        // Predicated region
        $region21: #{tpu_custom_call.1} parent=11 // pred_check
          %p290 = pneg %p109
        $region22: #{tpu_custom_call.1} parent=11 // pred_check_branch
          %292 = sbr.rel (%p290) target = $region24
        $region23: #{tpu_custom_call.1} parent=11 // pred_region
          _
        $region24: #{tpu_custom_call.1} parent=11 // pred_fallthru
          _
        // Predicated region
        $region25: #{tpu_custom_call.1} parent=11 // pred_check
          %p293 = pneg %p130
        $region26: #{tpu_custom_call.1} parent=11 // pred_check_branch
          %295 = sbr.rel (%p293) target = $region28
        $region27: #{tpu_custom_call.1} parent=11 // pred_region
          _
        $region28: #{tpu_custom_call.1} parent=11 // pred_fallthru
          _
        // Predicated region
        $region29: #{tpu_custom_call.1} parent=11 // pred_check
          %p296 = pneg %p151
        $region30: #{tpu_custom_call.1} parent=11 // pred_check_branch
          %298 = sbr.rel (%p296) target = $region32
        $region31: #{tpu_custom_call.1} parent=11 // pred_region
          _
        $region32: #{tpu_custom_call.1} parent=11 // pred_fallthru
          _
        // Predicated region
        $region33: #{tpu_custom_call.1} parent=11 // pred_check
          %p299 = pneg %p172
        $region34: #{tpu_custom_call.1} parent=11 // pred_check_branch
          %301 = sbr.rel (%p299) target = $region36
        $region35: #{tpu_custom_call.1} parent=11 // pred_region
          _
        $region36: #{tpu_custom_call.1} parent=11 // pred_fallthru
          _
        // Predicated region
        $region37: #{tpu_custom_call.1} parent=11 // pred_check
          %p302 = pneg %p193
        $region38: #{tpu_custom_call.1} parent=11 // pred_check_branch
          %304 = sbr.rel (%p302) target = $region40
        $region39: #{tpu_custom_call.1} parent=11 // pred_region
          _
        $region40: #{tpu_custom_call.1} parent=11 // pred_fallthru
          _
        // Predicated region
        $region41: #{tpu_custom_call.1} parent=11 // pred_check
          %p305 = pneg %p214
        $region42: #{tpu_custom_call.1} parent=11 // pred_check_branch
          %307 = sbr.rel (%p305) target = $region44
        $region43: #{tpu_custom_call.1} parent=11 // pred_region
          _
        $region44: #{tpu_custom_call.1} parent=11 // pred_fallthru
          _
        // Predicated region
        $region45: #{tpu_custom_call.1} parent=11 // pred_check
          %p308 = pneg %p235
        $region46: #{tpu_custom_call.1} parent=11 // pred_check_branch
          %310 = sbr.rel (%p308) target = $region48
        $region47: #{tpu_custom_call.1} parent=11 // pred_region
          _
        $region48: #{tpu_custom_call.1} parent=11 // pred_fallthru
          _
      $region12: #{tpu_custom_call.1} parent=5 // pred_fallthru
        _
      %p311 = scmp.lt.s32.totalorder %s20, 2
      // Predicated region
      $region49: #{tpu_custom_call.1} parent=5 // pred_check
        %p312 = pneg %p311
      $region50: #{tpu_custom_call.1} parent=5 // pred_check_branch
        %314 = sbr.rel (%p312) target = $region52
      $region51: #{tpu_custom_call.1} parent=5 // pred_region
        // Predicated region
        $region53: #{tpu_custom_call.1} parent=51 // pred_check
          %p315 = pneg %p40
        $region54: #{tpu_custom_call.1} parent=51 // pred_check_branch
          %317 = sbr.rel (%p315) target = $region56
        $region55: #{tpu_custom_call.1} parent=51 // pred_region
          %p318 = scmp.lt.s32.totalorder %s20, 1
          %s319 = scalar_select %p318, %s20, 1
          %s320 = smul.addr %s319, 3
          %s321 = smul.addr %s320, 4
          %s322 = scalar_lea.vmem %s0, %s321
        $region56: #{tpu_custom_call.1} parent=51 // pred_fallthru
          _
      $region52: #{tpu_custom_call.1} parent=5 // pred_fallthru
        _
      %p323 = scmp.le.s32.totalorder 1, %s20
      %p324 = scmp.lt.s32.totalorder %s20, 3
      %p325 = pnand %p323, %p324
      %p326 = pneg %p325
      // Predicated region
      $region57: #{tpu_custom_call.1} parent=5 // pred_check
        _
      $region58: #{tpu_custom_call.1} parent=5 // pred_check_branch
        %328 = sbr.rel (%p325) target = $region60
      $region59: #{tpu_custom_call.1} parent=5 // pred_region
        %s329 = ssub.s32 %s20, 1
        // Predicated region
        $region61: #{tpu_custom_call.1} parent=59 // pred_check
          %p330 = pneg %p67
        $region62: #{tpu_custom_call.1} parent=59 // pred_check_branch
          %332 = sbr.rel (%p330) target = $region64
        $region63: #{tpu_custom_call.1} parent=59 // pred_region
          %333 = dma.done [#allocation3], 48
        $region64: #{tpu_custom_call.1} parent=59 // pred_fallthru
          _
        %p334 = scmp.lt.s32.totalorder %s25, 1
        %s335 = scalar_select %p334, %s25, 1
        %s336 = smul.addr %s335, 3
        %s337 = smul.addr %s336, 4
        %s338 = scalar_lea.vmem %s0, %s337
        %p339 = pneg %p46
        %p340 = pneg %p43
        %p341 = pneg %p67
        %p342 = pneg %p64
        %p343 = pneg %p88
        %p344 = pneg %p85
        %p345 = pneg %p109
        %p346 = pneg %p106
        %p347 = pneg %p130
        %p348 = pneg %p127
        %p349 = pneg %p151
        %p350 = pneg %p148
        %p351 = pneg %p172
        %p352 = pneg %p169
        %p353 = pneg %p193
        %p354 = pneg %p190
        %p355 = pneg %p214
        %p356 = pneg %p211
        %p357 = pneg %p235
        %p358 = pneg %p232
        %p359 = pneg %p261
        %p360 = pneg %p258
        %s361 = sand.u32 %s248, 1
        %s362 = scalar_lea.sflag [#allocation4], %s361
        %s363 = sand.u32 %s248, 1
        %s364 = smul.addr %s363, 24
        %s365 = scalar_lea.vmem [#allocation5], %s364
        %p366 = scmp.lt.s32.totalorder %s25, 1
        %s367 = scalar_select %p366, %s25, 1
        %s368 = smul.addr %s367, 3
        %s369 = smul.addr %s368, 4
        %s370 = scalar_lea.vmem %s0, %s369
        %v371 = vld [vmem:[%s370] sm:$0xff]
        %v372 = vld [vmem:[%s370 + $0x8] sm:$0xf]
        %v373 = vld [vmem:[#allocation2] sm:$0x7]
        %v374 = vld [vmem:[%s2] sm:$0xff]
        %v375 = vld [vmem:[%s3] sm:$0xff]
        %377 = vset.pattern.permute.xlu0 0
        %378 = vperm.xlu0 %377, %v375
        %v379 = vpop.permute.xlu0 %378
        %v383 = vcombine.high %v371, %v371
        %vm384 = vcmask 31744
        %v386 = vsel %vm384, %v374, 0
        %vm388 = vcmask 1043456
        %v389 = vsel %vm388, %v371, 0
        %v391 = vsel %vm388, %v383, 0
        %v393 = vsel %vm388, %v372, 0
        %395 = vmatprep.subr.mxu0 0.0
        %396 = vmatpush1.msra.mxu0 0.0
        %397 = vmatprep.subr.mxu0 0.0
        %398 = vmatpush1.msra.mxu0 0.0
        %399 = vmatprep.subr.mxu0 0.0
        %400 = vmatpush1.msra.mxu0 0.0
        %401 = vmatprep.subr.mxu0 0.0
        %402 = vmatpush1.msra.mxu0 0.0
        %403 = vmatprep.subr.mxu0 0.0
        %404 = vmatpush1.msra.mxu0 0.0
        %405 = vmatprep.subr.mxu0 0.0
        %406 = vmatpush1.msra.mxu0 0.0
        %407 = vmatprep.subr.mxu0 0.0
        %408 = vmatpush1.msra.mxu0 0.0
        %409 = vmatprep.subr.mxu0 0.0
        %410 = vmatpush1.msra.mxu0 0.0
        %411 = vmatprep.subr.mxu0 0.0
        %412 = vmatpush1.msra.mxu0 0.0
        %413 = vmatprep.subr.mxu0 0.0
        %414 = vmatpush1.msra.mxu0 0.0
        %415 = vmatprep.subr.mxu0 0.0
        %416 = vmatpush1.msra.mxu0 0.0
        %417 = vmatprep.subr.mxu0 0.0
        %418 = vmatpush1.msra.mxu0 0.0
        %419 = vmatprep.subr.mxu0 0.0
        %420 = vmatpush1.msra.mxu0 0.0
        %421 = vmatprep.subr.mxu0 0.0
        %422 = vmatpush1.msra.mxu0 0.0
        %423 = vmatprep.subr.mxu0 0.0
        %424 = vmatpush1.msra.mxu0 0.0
        %425 = vmatprep.subr.mxu0 %v391
        %426 = vmatpush1.msra.mxu0 %v389
        %427 = vmatprep.subr.mxu0 0.0
        %428 = vmatpush2.msra.mxu0 0.0
        %429 = vmatprep.subr.mxu0 0.0
        %430 = vmatpush2.msra.mxu0 0.0
        %431 = vmatprep.subr.mxu0 0.0
        %432 = vmatpush2.msra.mxu0 0.0
        %433 = vmatprep.subr.mxu0 0.0
        %434 = vmatpush2.msra.mxu0 0.0
        %435 = vmatprep.subr.mxu0 0.0
        %436 = vmatpush2.msra.mxu0 0.0
        %437 = vmatprep.subr.mxu0 0.0
        %438 = vmatpush2.msra.mxu0 0.0
        %439 = vmatprep.subr.mxu0 0.0
        %440 = vmatpush2.msra.mxu0 0.0
        %441 = vmatprep.subr.mxu0 0.0
        %442 = vmatpush2.msra.mxu0 0.0
        %443 = vmatprep.subr.mxu0 0.0
        %444 = vmatpush2.msra.mxu0 0.0
        %445 = vmatprep.subr.mxu0 0.0
        %446 = vmatpush2.msra.mxu0 0.0
        %447 = vmatprep.subr.mxu0 0.0
        %448 = vmatpush2.msra.mxu0 0.0
        %449 = vmatprep.subr.mxu0 0.0
        %450 = vmatpush2.msra.mxu0 0.0
        %451 = vmatprep.subr.mxu0 0.0
        %452 = vmatpush2.msra.mxu0 0.0
        %453 = vmatprep.subr.mxu0 0.0
        %454 = vmatpush2.msra.mxu0 0.0
        %455 = vmatprep.subr.mxu0 0.0
        %456 = vmatpush2.msra.mxu0 0.0
        %457 = vmatprep.subr.mxu0 0.0
        %458 = vmatpush2.msra.mxu0 0.0
        %459 = vmatprep.mubr.f32.mxu0 0.0
        %460 = vmatmul.mubr.f32.gmra.mxu0 %v386
        %v461 = vpop.f32.mrf.mxu0
        %v462 = vadd.f32 %v379, %v461
        %v463 = vpop.f32.mrf.mxu0
        %v464 = vadd.f32 %v379, %v463
        %465 = vdwg.mxu0
        %466 = vmatprep.subr.mxu0 0.0
        %467 = vmatpush1.msra.mxu0 0.0
        %468 = vmatprep.subr.mxu0 0.0
        %469 = vmatpush1.msra.mxu0 0.0
        %470 = vmatprep.subr.mxu0 0.0
        %471 = vmatpush1.msra.mxu0 0.0
        %472 = vmatprep.subr.mxu0 0.0
        %473 = vmatpush1.msra.mxu0 0.0
        %474 = vmatprep.subr.mxu0 0.0
        %475 = vmatpush1.msra.mxu0 0.0
        %476 = vmatprep.subr.mxu0 0.0
        %477 = vmatpush1.msra.mxu0 0.0
        %478 = vmatprep.subr.mxu0 0.0
        %479 = vmatpush1.msra.mxu0 0.0
        %480 = vmatprep.subr.mxu0 0.0
        %481 = vmatpush1.msra.mxu0 0.0
        %482 = vmatprep.subr.mxu0 0.0
        %483 = vmatpush1.msra.mxu0 0.0
        %484 = vmatprep.subr.mxu0 0.0
        %485 = vmatpush1.msra.mxu0 0.0
        %486 = vmatprep.subr.mxu0 0.0
        %487 = vmatpush1.msra.mxu0 0.0
        %488 = vmatprep.subr.mxu0 0.0
        %489 = vmatpush1.msra.mxu0 0.0
        %490 = vmatprep.subr.mxu0 0.0
        %491 = vmatpush1.msra.mxu0 0.0
        %492 = vmatprep.subr.mxu0 0.0
        %493 = vmatpush1.msra.mxu0 0.0
        %494 = vmatprep.subr.mxu0 0.0
        %495 = vmatpush1.msra.mxu0 0.0
        %496 = vmatprep.subr.mxu0 0.0
        %497 = vmatpush1.msra.mxu0 %v393
        %498 = vmatprep.subr.mxu0 0.0
        %499 = vmatpush2.msra.mxu0 0.0
        %500 = vmatprep.subr.mxu0 0.0
        %501 = vmatpush2.msra.mxu0 0.0
        %502 = vmatprep.subr.mxu0 0.0
        %503 = vmatpush2.msra.mxu0 0.0
        %504 = vmatprep.subr.mxu0 0.0
        %505 = vmatpush2.msra.mxu0 0.0
        %506 = vmatprep.subr.mxu0 0.0
        %507 = vmatpush2.msra.mxu0 0.0
        %508 = vmatprep.subr.mxu0 0.0
        %509 = vmatpush2.msra.mxu0 0.0
        %510 = vmatprep.subr.mxu0 0.0
        %511 = vmatpush2.msra.mxu0 0.0
        %512 = vmatprep.subr.mxu0 0.0
        %513 = vmatpush2.msra.mxu0 0.0
        %514 = vmatprep.subr.mxu0 0.0
        %515 = vmatpush2.msra.mxu0 0.0
        %516 = vmatprep.subr.mxu0 0.0
        %517 = vmatpush2.msra.mxu0 0.0
        %518 = vmatprep.subr.mxu0 0.0
        %519 = vmatpush2.msra.mxu0 0.0
        %520 = vmatprep.subr.mxu0 0.0
        %521 = vmatpush2.msra.mxu0 0.0
        %522 = vmatprep.subr.mxu0 0.0
        %523 = vmatpush2.msra.mxu0 0.0
        %524 = vmatprep.subr.mxu0 0.0
        %525 = vmatpush2.msra.mxu0 0.0
        %526 = vmatprep.subr.mxu0 0.0
        %527 = vmatpush2.msra.mxu0 0.0
        %528 = vmatprep.subr.mxu0 0.0
        %529 = vmatpush2.msra.mxu0 0.0
        %530 = vmatprep.mubr.f32.mxu0 0.0
        %531 = vmatmul.mubr.f32.gmra.mxu0 %v386
        %v532 = vpop.f32.mrf.mxu0
        %v533 = vadd.f32 %v379, %v532
        %v534 = vpop.f32.mrf.mxu0
        %535 = vdwg.mxu0
        %v536 = vsub.f32 0.0, %v462
        %v537 = vsub.f32 0.0, %v464
        %v538 = vsub.f32 0.0, %v533
        %v539 = vmul.f32 %v536, 1.442695
        %v540 = vpow.pop %v539
        %v541 = vmul.f32 %v537, 1.442695
        %v542 = vpow.pop %v541
        %v543 = vmul.f32 %v538, 1.442695
        %v544 = vpow.pop %v543
        %v545 = vadd.f32 %v540, 1.0
        %v546 = vadd.f32 %v542, 1.0
        %v547 = vadd.f32 %v544, 1.0
        %v548 = vrcp.pop %v545
        %v549 = vrcp.pop %v546
        %v550 = vrcp.pop %v547
        %v551 = vmul.f32 %v462, %v548
        %v552 = vmul.f32 %v464, %v549
        %v553 = vmul.f32 %v533, %v550
        %v555 = vlaneseq
        %v556 = vshrl.u32 %v555, 7
        %v557 = vsub.s32 0, %v556
        %v558 = vrot.slane %v373, %v557
        %v559 = vlaneseq
        %v560 = vshrl.u32 %v559, 7
        %v561 = vsub.s32 1, %v560
        %v562 = vrot.slane %v373, %v561
        %v563 = vlaneseq
        %v564 = vshrl.u32 %v563, 7
        %v565 = vsub.s32 2, %v564
        %v566 = vrot.slane %v373, %v565
        %v570 = vmul.f32 %v558, %v551
        %v571 = vmul.f32 %v562, %v552
        %v572 = vmul.f32 %v566, %v553
        %v576 = vrot.slane %v570, 4
        %v577 = vrot.slane %v571, 4
        %v578 = vrot.slane %v572, 4
        %582 = vrot.lane.b32.xlu0 %v576, 19
        %v583 = vpop.permute.xlu0 %582
        %584 = vrot.lane.b32.xlu0 %v577, 19
        %v585 = vpop.permute.xlu0 %584
        %586 = vrot.lane.b32.xlu0 %v578, 19
        %v587 = vpop.permute.xlu0 %586
        %v588 = vlaneseq
        %v589 = vand.u32 %v588, 127
        %vm590 = vcmp.lt.s32.totalorder %v589, 19
        %v591 = vsel %vm590, %v585, %v587
        %v592 = vsel %vm590, %v583, %v585
        %v593 = vsel %vm590, %v587, %v583
        %594 = vrot.lane.b32.xlu0 %v576, 18
        %v595 = vpop.permute.xlu0 %594
        %596 = vrot.lane.b32.xlu0 %v577, 18
        %v597 = vpop.permute.xlu0 %596
        %598 = vrot.lane.b32.xlu0 %v578, 18
        %v599 = vpop.permute.xlu0 %598
        %vm600 = vcmp.lt.s32.totalorder %v589, 18
        %v601 = vsel %vm600, %v597, %v599
        %v602 = vsel %vm600, %v595, %v597
        %v603 = vsel %vm600, %v599, %v595
        %604 = vrot.lane.b32.xlu0 %v576, 17
        %v605 = vpop.permute.xlu0 %604
        %606 = vrot.lane.b32.xlu0 %v577, 17
        %v607 = vpop.permute.xlu0 %606
        %608 = vrot.lane.b32.xlu0 %v578, 17
        %v609 = vpop.permute.xlu0 %608
        %vm610 = vcmp.lt.s32.totalorder %v589, 17
        %v611 = vsel %vm610, %v607, %v609
        %v612 = vsel %vm610, %v605, %v607
        %v613 = vsel %vm610, %v609, %v605
        %614 = vrot.lane.b32.xlu0 %v576, 1
        %v615 = vpop.permute.xlu0 %614
        %616 = vrot.lane.b32.xlu0 %v577, 1
        %v617 = vpop.permute.xlu0 %616
        %618 = vrot.lane.b32.xlu0 %v578, 1
        %v619 = vpop.permute.xlu0 %618
        %vm620 = vcmp.lt.s32.totalorder %v589, 1
        %v621 = vsel %vm620, %v617, %v619
        %v622 = vsel %vm620, %v615, %v617
        %v623 = vsel %vm620, %v619, %v615
        %624 = vrot.lane.b32.xlu0 %v576, 127
        %v625 = vpop.permute.xlu0 %624
        %626 = vrot.lane.b32.xlu0 %v577, 127
        %v627 = vpop.permute.xlu0 %626
        %628 = vrot.lane.b32.xlu0 %v578, 127
        %v629 = vpop.permute.xlu0 %628
        %vm630 = vcmp.lt.s32.totalorder %v589, 127
        %v631 = vsel %vm630, %v627, %v629
        %v632 = vsel %vm630, %v625, %v627
        %v633 = vsel %vm630, %v629, %v625
        %634 = vrot.lane.b32.xlu0 %v576, 111
        %v635 = vpop.permute.xlu0 %634
        %636 = vrot.lane.b32.xlu0 %v577, 111
        %v637 = vpop.permute.xlu0 %636
        %638 = vrot.lane.b32.xlu0 %v578, 111
        %v639 = vpop.permute.xlu0 %638
        %vm640 = vcmp.lt.s32.totalorder %v589, 111
        %v641 = vsel %vm640, %v637, %v639
        %v642 = vsel %vm640, %v635, %v637
        %v643 = vsel %vm640, %v639, %v635
        %644 = vrot.lane.b32.xlu0 %v576, 110
        %v645 = vpop.permute.xlu0 %644
        %646 = vrot.lane.b32.xlu0 %v577, 110
        %v647 = vpop.permute.xlu0 %646
        %648 = vrot.lane.b32.xlu0 %v578, 110
        %v649 = vpop.permute.xlu0 %648
        %vm650 = vcmp.lt.s32.totalorder %v589, 110
        %v651 = vsel %vm650, %v647, %v649
        %v652 = vsel %vm650, %v645, %v647
        %v653 = vsel %vm650, %v649, %v645
        %654 = vrot.lane.b32.xlu0 %v576, 109
        %v655 = vpop.permute.xlu0 %654
        %656 = vrot.lane.b32.xlu0 %v577, 109
        %v657 = vpop.permute.xlu0 %656
        %658 = vrot.lane.b32.xlu0 %v578, 109
        %v659 = vpop.permute.xlu0 %658
        %vm660 = vcmp.lt.s32.totalorder %v589, 109
        %v661 = vsel %vm660, %v657, %v659
        %v662 = vsel %vm660, %v655, %v657
        %v663 = vsel %vm660, %v659, %v655
        %v667 = vrot.slane %v603, 4
        %v668 = vrot.slane %v602, 4
        %v669 = vrot.slane %v601, 4
        %v676 = vrot.slane %v623, 4
        %v677 = vrot.slane %v622, 4
        %v678 = vrot.slane %v621, 4
        %v685 = vrot.slane %v632, 4
        %v686 = vrot.slane %v631, 4
        %v687 = vrot.slane %v633, 4
        %v694 = vrot.slane %v652, 4
        %v695 = vrot.slane %v651, 4
        %v696 = vrot.slane %v653, 4
        %v700 = vsel %vm388, %v593, %v667
        %v701 = vsel %vm388, %v592, %v668
        %v702 = vsel %vm388, %v591, %v669
        %v703 = vsel %vm388, %v613, %v676
        %v704 = vsel %vm388, %v612, %v677
        %v705 = vsel %vm388, %v611, %v678
        %v706 = vsel %vm388, %v576, %v685
        %v707 = vsel %vm388, %v577, %v686
        %v708 = vsel %vm388, %v578, %v687
        %v709 = vsel %vm388, %v642, %v694
        %v710 = vsel %vm388, %v641, %v695
        %v711 = vsel %vm388, %v643, %v696
        %v712 = vld [vmem:[%s4] sm:$0x3]
        %v713 = vld [vmem:[%s5] sm:$0x3]
        %715 = vset.pattern.permute.xlu0 0
        %716 = vperm.xlu0 %715, %v713
        %v717 = vpop.permute.xlu0 %716
        %vm719 = vcmask 293888
        %v721 = vsel %vm719, %v712, 0
        %v724 = vsel %vm388, %v662, 0
        %v727 = vsel %vm388, %v661, 0
        %v730 = vsel %vm388, %v663, 0
        %732 = vmatprep.subr.mxu0 0.0
        %733 = vmatpush1.msra.mxu0 0.0
        %734 = vmatprep.subr.mxu0 0.0
        %735 = vmatpush1.msra.mxu0 0.0
        %736 = vmatprep.subr.mxu0 0.0
        %737 = vmatpush1.msra.mxu0 0.0
        %738 = vmatprep.subr.mxu0 0.0
        %739 = vmatpush1.msra.mxu0 0.0
        %740 = vmatprep.subr.mxu0 0.0
        %741 = vmatpush1.msra.mxu0 0.0
        %742 = vmatprep.subr.mxu0 0.0
        %743 = vmatpush1.msra.mxu0 0.0
        %744 = vmatprep.subr.mxu0 0.0
        %745 = vmatpush1.msra.mxu0 0.0
        %746 = vmatprep.subr.mxu0 0.0
        %747 = vmatpush1.msra.mxu0 0.0
        %748 = vmatprep.subr.mxu0 0.0
        %749 = vmatpush1.msra.mxu0 0.0
        %750 = vmatprep.subr.mxu0 0.0
        %751 = vmatpush1.msra.mxu0 0.0
        %752 = vmatprep.subr.mxu0 0.0
        %753 = vmatpush1.msra.mxu0 0.0
        %754 = vmatprep.subr.mxu0 %v727
        %755 = vmatpush1.msra.mxu0 %v724
        %756 = vmatprep.subr.mxu0 %v710
        %757 = vmatpush1.msra.mxu0 %v709
        %758 = vmatprep.subr.mxu0 %v707
        %759 = vmatpush1.msra.mxu0 %v706
        %760 = vmatprep.subr.mxu0 %v704
        %761 = vmatpush1.msra.mxu0 %v703
        %762 = vmatprep.subr.mxu0 %v701
        %763 = vmatpush1.msra.mxu0 %v700
        %764 = vmatprep.subr.mxu0 0.0
        %765 = vmatpush2.msra.mxu0 0.0
        %766 = vmatprep.subr.mxu0 0.0
        %767 = vmatpush2.msra.mxu0 0.0
        %768 = vmatprep.subr.mxu0 0.0
        %769 = vmatpush2.msra.mxu0 0.0
        %770 = vmatprep.subr.mxu0 0.0
        %771 = vmatpush2.msra.mxu0 0.0
        %772 = vmatprep.subr.mxu0 0.0
        %773 = vmatpush2.msra.mxu0 0.0
        %774 = vmatprep.subr.mxu0 0.0
        %775 = vmatpush2.msra.mxu0 0.0
        %776 = vmatprep.subr.mxu0 0.0
        %777 = vmatpush2.msra.mxu0 0.0
        %778 = vmatprep.subr.mxu0 0.0
        %779 = vmatpush2.msra.mxu0 0.0
        %780 = vmatprep.subr.mxu0 0.0
        %781 = vmatpush2.msra.mxu0 0.0
        %782 = vmatprep.subr.mxu0 0.0
        %783 = vmatpush2.msra.mxu0 0.0
        %784 = vmatprep.subr.mxu0 0.0
        %785 = vmatpush2.msra.mxu0 0.0
        %786 = vmatprep.subr.mxu0 0.0
        %787 = vmatpush2.msra.mxu0 0.0
        %788 = vmatprep.subr.mxu0 0.0
        %789 = vmatpush2.msra.mxu0 0.0
        %790 = vmatprep.subr.mxu0 0.0
        %791 = vmatpush2.msra.mxu0 0.0
        %792 = vmatprep.subr.mxu0 0.0
        %793 = vmatpush2.msra.mxu0 0.0
        %794 = vmatprep.subr.mxu0 0.0
        %795 = vmatpush2.msra.mxu0 0.0
        %796 = vmatprep.mubr.f32.mxu0 0.0
        %797 = vmatmul.mubr.f32.gmra.mxu0 %v721
        %v798 = vpop.f32.mrf.mxu0
        %v799 = vadd.f32 %v717, %v798
        %v800 = vpop.f32.mrf.mxu0
        %v801 = vadd.f32 %v717, %v800
        %802 = vdwg.mxu0
        %803 = vmatprep.subr.mxu0 0.0
        %804 = vmatpush1.msra.mxu0 0.0
        %805 = vmatprep.subr.mxu0 0.0
        %806 = vmatpush1.msra.mxu0 0.0
        %807 = vmatprep.subr.mxu0 0.0
        %808 = vmatpush1.msra.mxu0 0.0
        %809 = vmatprep.subr.mxu0 0.0
        %810 = vmatpush1.msra.mxu0 0.0
        %811 = vmatprep.subr.mxu0 0.0
        %812 = vmatpush1.msra.mxu0 0.0
        %813 = vmatprep.subr.mxu0 0.0
        %814 = vmatpush1.msra.mxu0 0.0
        %815 = vmatprep.subr.mxu0 0.0
        %816 = vmatpush1.msra.mxu0 0.0
        %817 = vmatprep.subr.mxu0 0.0
        %818 = vmatpush1.msra.mxu0 0.0
        %819 = vmatprep.subr.mxu0 0.0
        %820 = vmatpush1.msra.mxu0 0.0
        %821 = vmatprep.subr.mxu0 0.0
        %822 = vmatpush1.msra.mxu0 0.0
        %823 = vmatprep.subr.mxu0 0.0
        %824 = vmatpush1.msra.mxu0 0.0
        %825 = vmatprep.subr.mxu0 0.0
        %826 = vmatpush1.msra.mxu0 %v730
        %827 = vmatprep.subr.mxu0 0.0
        %828 = vmatpush1.msra.mxu0 %v711
        %829 = vmatprep.subr.mxu0 0.0
        %830 = vmatpush1.msra.mxu0 %v708
        %831 = vmatprep.subr.mxu0 0.0
        %832 = vmatpush1.msra.mxu0 %v705
        %833 = vmatprep.subr.mxu0 0.0
        %834 = vmatpush1.msra.mxu0 %v702
        %835 = vmatprep.subr.mxu0 0.0
        %836 = vmatpush2.msra.mxu0 0.0
        %837 = vmatprep.subr.mxu0 0.0
        %838 = vmatpush2.msra.mxu0 0.0
        %839 = vmatprep.subr.mxu0 0.0
        %840 = vmatpush2.msra.mxu0 0.0
        %841 = vmatprep.subr.mxu0 0.0
        %842 = vmatpush2.msra.mxu0 0.0
        %843 = vmatprep.subr.mxu0 0.0
        %844 = vmatpush2.msra.mxu0 0.0
        %845 = vmatprep.subr.mxu0 0.0
        %846 = vmatpush2.msra.mxu0 0.0
        %847 = vmatprep.subr.mxu0 0.0
        %848 = vmatpush2.msra.mxu0 0.0
        %849 = vmatprep.subr.mxu0 0.0
        %850 = vmatpush2.msra.mxu0 0.0
        %851 = vmatprep.subr.mxu0 0.0
        %852 = vmatpush2.msra.mxu0 0.0
        %853 = vmatprep.subr.mxu0 0.0
        %854 = vmatpush2.msra.mxu0 0.0
        %855 = vmatprep.subr.mxu0 0.0
        %856 = vmatpush2.msra.mxu0 0.0
        %857 = vmatprep.subr.mxu0 0.0
        %858 = vmatpush2.msra.mxu0 0.0
        %859 = vmatprep.subr.mxu0 0.0
        %860 = vmatpush2.msra.mxu0 0.0
        %861 = vmatprep.subr.mxu0 0.0
        %862 = vmatpush2.msra.mxu0 0.0
        %863 = vmatprep.subr.mxu0 0.0
        %864 = vmatpush2.msra.mxu0 0.0
        %865 = vmatprep.subr.mxu0 0.0
        %866 = vmatpush2.msra.mxu0 0.0
        %867 = vmatprep.mubr.f32.mxu0 0.0
        %868 = vmatmul.mubr.f32.gmra.mxu0 %v721
        %v869 = vpop.f32.mrf.mxu0
        %v870 = vadd.f32 %v717, %v869
        %v871 = vpop.f32.mrf.mxu0
        %872 = vdwg.mxu0
        %v873 = vsub.f32 0.0, %v799
        %v874 = vsub.f32 0.0, %v801
        %v875 = vsub.f32 0.0, %v870
        %v876 = vmul.f32 %v873, 1.442695
        %v877 = vpow.pop %v876
        %v878 = vmul.f32 %v874, 1.442695
        %v879 = vpow.pop %v878
        %v880 = vmul.f32 %v875, 1.442695
        %v881 = vpow.pop %v880
        %v882 = vadd.f32 %v877, 1.0
        %v883 = vadd.f32 %v879, 1.0
        %v884 = vadd.f32 %v881, 1.0
        %v885 = vrcp.pop %v882
        %v886 = vrcp.pop %v883
        %v887 = vrcp.pop %v884
        %v888 = vmul.f32 %v799, %v885
        %v889 = vmul.f32 %v801, %v886
        %v890 = vmul.f32 %v870, %v887
        %v891 = vmul.f32 %v558, %v888
        %v892 = vmul.f32 %v562, %v889
        %v893 = vmul.f32 %v566, %v890
        %894 = vrot.lane.b32.xlu0 %v891, 19
        %v895 = vpop.permute.xlu0 %894
        %896 = vrot.lane.b32.xlu0 %v892, 19
        %v897 = vpop.permute.xlu0 %896
        %898 = vrot.lane.b32.xlu0 %v893, 19
        %v899 = vpop.permute.xlu0 %898
        %v900 = vsel %vm590, %v897, %v899
        %v901 = vsel %vm590, %v895, %v897
        %v902 = vsel %vm590, %v899, %v895
        %903 = vrot.lane.b32.xlu0 %v891, 18
        %v904 = vpop.permute.xlu0 %903
        %905 = vrot.lane.b32.xlu0 %v892, 18
        %v906 = vpop.permute.xlu0 %905
        %907 = vrot.lane.b32.xlu0 %v893, 18
        %v908 = vpop.permute.xlu0 %907
        %v909 = vsel %vm600, %v906, %v908
        %v910 = vsel %vm600, %v904, %v906
        %v911 = vsel %vm600, %v908, %v904
        %912 = vrot.lane.b32.xlu0 %v891, 17
        %v913 = vpop.permute.xlu0 %912
        %914 = vrot.lane.b32.xlu0 %v892, 17
        %v915 = vpop.permute.xlu0 %914
        %916 = vrot.lane.b32.xlu0 %v893, 17
        %v917 = vpop.permute.xlu0 %916
        %v918 = vsel %vm610, %v915, %v917
        %v919 = vsel %vm610, %v913, %v915
        %v920 = vsel %vm610, %v917, %v913
        %921 = vrot.lane.b32.xlu0 %v891, 1
        %v922 = vpop.permute.xlu0 %921
        %923 = vrot.lane.b32.xlu0 %v892, 1
        %v924 = vpop.permute.xlu0 %923
        %925 = vrot.lane.b32.xlu0 %v893, 1
        %v926 = vpop.permute.xlu0 %925
        %v927 = vsel %vm620, %v924, %v926
        %v928 = vsel %vm620, %v922, %v924
        %v929 = vsel %vm620, %v926, %v922
        %930 = vrot.lane.b32.xlu0 %v891, 127
        %v931 = vpop.permute.xlu0 %930
        %932 = vrot.lane.b32.xlu0 %v892, 127
        %v933 = vpop.permute.xlu0 %932
        %934 = vrot.lane.b32.xlu0 %v893, 127
        %v935 = vpop.permute.xlu0 %934
        %v936 = vsel %vm630, %v933, %v935
        %v937 = vsel %vm630, %v931, %v933
        %v938 = vsel %vm630, %v935, %v931
        %939 = vrot.lane.b32.xlu0 %v891, 111
        %v940 = vpop.permute.xlu0 %939
        %941 = vrot.lane.b32.xlu0 %v892, 111
        %v942 = vpop.permute.xlu0 %941
        %943 = vrot.lane.b32.xlu0 %v893, 111
        %v944 = vpop.permute.xlu0 %943
        %v945 = vsel %vm640, %v942, %v944
        %v946 = vsel %vm640, %v940, %v942
        %v947 = vsel %vm640, %v944, %v940
        %948 = vrot.lane.b32.xlu0 %v891, 110
        %v949 = vpop.permute.xlu0 %948
        %950 = vrot.lane.b32.xlu0 %v892, 110
        %v951 = vpop.permute.xlu0 %950
        %952 = vrot.lane.b32.xlu0 %v893, 110
        %v953 = vpop.permute.xlu0 %952
        %v954 = vsel %vm650, %v951, %v953
        %v955 = vsel %vm650, %v949, %v951
        %v956 = vsel %vm650, %v953, %v949
        %957 = vrot.lane.b32.xlu0 %v891, 109
        %v958 = vpop.permute.xlu0 %957
        %959 = vrot.lane.b32.xlu0 %v892, 109
        %v960 = vpop.permute.xlu0 %959
        %961 = vrot.lane.b32.xlu0 %v893, 109
        %v962 = vpop.permute.xlu0 %961
        %v963 = vsel %vm660, %v960, %v962
        %v964 = vsel %vm660, %v958, %v960
        %v965 = vsel %vm660, %v962, %v958
        %v969 = vrot.slane %v911, 6
        %v970 = vrot.slane %v910, 6
        %v971 = vrot.slane %v909, 6
        %v978 = vrot.slane %v920, 4
        %v979 = vrot.slane %v919, 4
        %v980 = vrot.slane %v918, 4
        %v987 = vrot.slane %v929, 2
        %v988 = vrot.slane %v928, 2
        %v989 = vrot.slane %v927, 2
        %v996 = vrot.slane %v937, 6
        %v997 = vrot.slane %v936, 6
        %v998 = vrot.slane %v938, 6
        %v1005 = vrot.slane %v946, 4
        %v1006 = vrot.slane %v945, 4
        %v1007 = vrot.slane %v947, 4
        %v1014 = vrot.slane %v955, 2
        %v1015 = vrot.slane %v954, 2
        %v1016 = vrot.slane %v956, 2
        %vm1020 = vcmask 1041408
        %v1021 = vsel %vm1020, %v902, %v969
        %v1022 = vsel %vm1020, %v901, %v970
        %v1023 = vsel %vm1020, %v900, %v971
        %v1024 = vsel %vm388, %v1021, %v978
        %v1025 = vsel %vm388, %v1022, %v979
        %v1026 = vsel %vm388, %v1023, %v980
        %vm1027 = vcmask 1045504
        %v1028 = vsel %vm1027, %v1024, %v987
        %v1029 = vsel %vm1027, %v1025, %v988
        %v1030 = vsel %vm1027, %v1026, %v989
        %v1031 = vsel %vm1020, %v891, %v996
        %v1032 = vsel %vm1020, %v892, %v997
        %v1033 = vsel %vm1020, %v893, %v998
        %v1034 = vsel %vm388, %v1031, %v1005
        %v1035 = vsel %vm388, %v1032, %v1006
        %v1036 = vsel %vm388, %v1033, %v1007
        %v1037 = vsel %vm1027, %v1034, %v1014
        %v1038 = vsel %vm1027, %v1035, %v1015
        %v1039 = vsel %vm1027, %v1036, %v1016
        %v1040 = vld [vmem:[%s6] sm:$0xf]
        %v1041 = vld [vmem:[%s7] sm:$0xf]
        %1043 = vset.pattern.permute.xlu0 0
        %1044 = vperm.xlu0 %1043, %v1041
        %v1045 = vpop.permute.xlu0 %1044
        %vm1047 = vcmask 146432
        %v1049 = vsel %vm1047, %v1040, 0
        %v1052 = vsel %vm1020, %v964, 0
        %v1055 = vsel %vm1020, %v963, 0
        %v1058 = vsel %vm1020, %v965, 0
        %1060 = vmatprep.subr.mxu0 0.0
        %1061 = vmatpush1.msra.mxu0 0.0
        %1062 = vmatprep.subr.mxu0 0.0
        %1063 = vmatpush1.msra.mxu0 0.0
        %1064 = vmatprep.subr.mxu0 0.0
        %1065 = vmatpush1.msra.mxu0 0.0
        %1066 = vmatprep.subr.mxu0 0.0
        %1067 = vmatpush1.msra.mxu0 0.0
        %1068 = vmatprep.subr.mxu0 0.0
        %1069 = vmatpush1.msra.mxu0 0.0
        %1070 = vmatprep.subr.mxu0 0.0
        %1071 = vmatpush1.msra.mxu0 0.0
        %1072 = vmatprep.subr.mxu0 0.0
        %1073 = vmatpush1.msra.mxu0 0.0
        %1074 = vmatprep.subr.mxu0 0.0
        %1075 = vmatpush1.msra.mxu0 0.0
        %1076 = vmatprep.subr.mxu0 0.0
        %1077 = vmatpush1.msra.mxu0 0.0
        %1078 = vmatprep.subr.mxu0 0.0
        %1079 = vmatpush1.msra.mxu0 0.0
        %1080 = vmatprep.subr.mxu0 0.0
        %1081 = vmatpush1.msra.mxu0 0.0
        %1082 = vmatprep.subr.mxu0 0.0
        %1083 = vmatpush1.msra.mxu0 0.0
        %1084 = vmatprep.subr.mxu0 0.0
        %1085 = vmatpush1.msra.mxu0 0.0
        %1086 = vmatprep.subr.mxu0 %v1055
        %1087 = vmatpush1.msra.mxu0 %v1052
        %1088 = vmatprep.subr.mxu0 %v1038
        %1089 = vmatpush1.msra.mxu0 %v1037
        %1090 = vmatprep.subr.mxu0 %v1029
        %1091 = vmatpush1.msra.mxu0 %v1028
        %1092 = vmatprep.subr.mxu0 0.0
        %1093 = vmatpush2.msra.mxu0 0.0
        %1094 = vmatprep.subr.mxu0 0.0
        %1095 = vmatpush2.msra.mxu0 0.0
        %1096 = vmatprep.subr.mxu0 0.0
        %1097 = vmatpush2.msra.mxu0 0.0
        %1098 = vmatprep.subr.mxu0 0.0
        %1099 = vmatpush2.msra.mxu0 0.0
        %1100 = vmatprep.subr.mxu0 0.0
        %1101 = vmatpush2.msra.mxu0 0.0
        %1102 = vmatprep.subr.mxu0 0.0
        %1103 = vmatpush2.msra.mxu0 0.0
        %1104 = vmatprep.subr.mxu0 0.0
        %1105 = vmatpush2.msra.mxu0 0.0
        %1106 = vmatprep.subr.mxu0 0.0
        %1107 = vmatpush2.msra.mxu0 0.0
        %1108 = vmatprep.subr.mxu0 0.0
        %1109 = vmatpush2.msra.mxu0 0.0
        %1110 = vmatprep.subr.mxu0 0.0
        %1111 = vmatpush2.msra.mxu0 0.0
        %1112 = vmatprep.subr.mxu0 0.0
        %1113 = vmatpush2.msra.mxu0 0.0
        %1114 = vmatprep.subr.mxu0 0.0
        %1115 = vmatpush2.msra.mxu0 0.0
        %1116 = vmatprep.subr.mxu0 0.0
        %1117 = vmatpush2.msra.mxu0 0.0
        %1118 = vmatprep.subr.mxu0 0.0
        %1119 = vmatpush2.msra.mxu0 0.0
        %1120 = vmatprep.subr.mxu0 0.0
        %1121 = vmatpush2.msra.mxu0 0.0
        %1122 = vmatprep.subr.mxu0 0.0
        %1123 = vmatpush2.msra.mxu0 0.0
        %1124 = vmatprep.mubr.f32.mxu0 0.0
        %1125 = vmatmul.mubr.f32.gmra.mxu0 %v1049
        %v1126 = vpop.f32.mrf.mxu0
        %v1127 = vadd.f32 %v1045, %v1126
        %v1128 = vpop.f32.mrf.mxu0
        %v1129 = vadd.f32 %v1045, %v1128
        %1130 = vdwg.mxu0
        %1131 = vmatprep.subr.mxu0 0.0
        %1132 = vmatpush1.msra.mxu0 0.0
        %1133 = vmatprep.subr.mxu0 0.0
        %1134 = vmatpush1.msra.mxu0 0.0
        %1135 = vmatprep.subr.mxu0 0.0
        %1136 = vmatpush1.msra.mxu0 0.0
        %1137 = vmatprep.subr.mxu0 0.0
        %1138 = vmatpush1.msra.mxu0 0.0
        %1139 = vmatprep.subr.mxu0 0.0
        %1140 = vmatpush1.msra.mxu0 0.0
        %1141 = vmatprep.subr.mxu0 0.0
        %1142 = vmatpush1.msra.mxu0 0.0
        %1143 = vmatprep.subr.mxu0 0.0
        %1144 = vmatpush1.msra.mxu0 0.0
        %1145 = vmatprep.subr.mxu0 0.0
        %1146 = vmatpush1.msra.mxu0 0.0
        %1147 = vmatprep.subr.mxu0 0.0
        %1148 = vmatpush1.msra.mxu0 0.0
        %1149 = vmatprep.subr.mxu0 0.0
        %1150 = vmatpush1.msra.mxu0 0.0
        %1151 = vmatprep.subr.mxu0 0.0
        %1152 = vmatpush1.msra.mxu0 0.0
        %1153 = vmatprep.subr.mxu0 0.0
        %1154 = vmatpush1.msra.mxu0 0.0
        %1155 = vmatprep.subr.mxu0 0.0
        %1156 = vmatpush1.msra.mxu0 0.0
        %1157 = vmatprep.subr.mxu0 0.0
        %1158 = vmatpush1.msra.mxu0 %v1058
        %1159 = vmatprep.subr.mxu0 0.0
        %1160 = vmatpush1.msra.mxu0 %v1039
        %1161 = vmatprep.subr.mxu0 0.0
        %1162 = vmatpush1.msra.mxu0 %v1030
        %1163 = vmatprep.subr.mxu0 0.0
        %1164 = vmatpush2.msra.mxu0 0.0
        %1165 = vmatprep.subr.mxu0 0.0
        %1166 = vmatpush2.msra.mxu0 0.0
        %1167 = vmatprep.subr.mxu0 0.0
        %1168 = vmatpush2.msra.mxu0 0.0
        %1169 = vmatprep.subr.mxu0 0.0
        %1170 = vmatpush2.msra.mxu0 0.0
        %1171 = vmatprep.subr.mxu0 0.0
        %1172 = vmatpush2.msra.mxu0 0.0
        %1173 = vmatprep.subr.mxu0 0.0
        %1174 = vmatpush2.msra.mxu0 0.0
        %1175 = vmatprep.subr.mxu0 0.0
        %1176 = vmatpush2.msra.mxu0 0.0
        %1177 = vmatprep.subr.mxu0 0.0
        %1178 = vmatpush2.msra.mxu0 0.0
        %1179 = vmatprep.subr.mxu0 0.0
        %1180 = vmatpush2.msra.mxu0 0.0
        %1181 = vmatprep.subr.mxu0 0.0
        %1182 = vmatpush2.msra.mxu0 0.0
        %1183 = vmatprep.subr.mxu0 0.0
        %1184 = vmatpush2.msra.mxu0 0.0
        %1185 = vmatprep.subr.mxu0 0.0
        %1186 = vmatpush2.msra.mxu0 0.0
        %1187 = vmatprep.subr.mxu0 0.0
        %1188 = vmatpush2.msra.mxu0 0.0
        %1189 = vmatprep.subr.mxu0 0.0
        %1190 = vmatpush2.msra.mxu0 0.0
        %1191 = vmatprep.subr.mxu0 0.0
        %1192 = vmatpush2.msra.mxu0 0.0
        %1193 = vmatprep.subr.mxu0 0.0
        %1194 = vmatpush2.msra.mxu0 0.0
        %1195 = vmatprep.mubr.f32.mxu0 0.0
        %1196 = vmatmul.mubr.f32.gmra.mxu0 %v1049
        %v1197 = vpop.f32.mrf.mxu0
        %v1198 = vadd.f32 %v1045, %v1197
        %v1199 = vpop.f32.mrf.mxu0
        %1200 = vdwg.mxu0
        %v1201 = vsub.f32 0.0, %v1127
        %v1202 = vsub.f32 0.0, %v1129
        %v1203 = vsub.f32 0.0, %v1198
        %v1204 = vmul.f32 %v1201, 1.442695
        %v1205 = vpow.pop %v1204
        %v1206 = vmul.f32 %v1202, 1.442695
        %v1207 = vpow.pop %v1206
        %v1208 = vmul.f32 %v1203, 1.442695
        %v1209 = vpow.pop %v1208
        %v1210 = vadd.f32 %v1205, 1.0
        %v1211 = vadd.f32 %v1207, 1.0
        %v1212 = vadd.f32 %v1209, 1.0
        %v1213 = vrcp.pop %v1210
        %v1214 = vrcp.pop %v1211
        %v1215 = vrcp.pop %v1212
        %v1216 = vmul.f32 %v1127, %v1213
        %v1217 = vmul.f32 %v1129, %v1214
        %v1218 = vmul.f32 %v1198, %v1215
        %v1222 = vrot.slane %v1216, 4
        %v1223 = vrot.slane %v1217, 4
        %v1224 = vrot.slane %v1218, 4
        %v1228 = vadd.f32 %v570, %v1222
        %v1229 = vadd.f32 %v571, %v1223
        %v1230 = vadd.f32 %v572, %v1224
        %v1234 = vrot.slane %v1228, 4
        %v1235 = vrot.slane %v1229, 4
        %v1236 = vrot.slane %v1230, 4
        %v1237 = vsel %vm388, %v551, %v570
        %v1238 = vsel %vm388, %v552, %v571
        %v1239 = vsel %vm388, %v553, %v572
        %v1240 = vld [vmem:[%s8] sm:$0xff]
        %v1241 = vld [vmem:[%s9] sm:$0xff]
        %1243 = vset.pattern.permute.xlu0 0
        %1244 = vperm.xlu0 %1243, %v1241
        %v1245 = vpop.permute.xlu0 %1244
        %vm1247 = vcmask 97280
        %v1249 = vsel %vm1247, %v1240, 0
        %v1251 = vsel %vm388, %v1234, 0
        %v1253 = vsel %vm388, %v1235, 0
        %v1255 = vsel %vm388, %v1236, 0
        %1257 = vmatprep.subr.mxu0 0.0
        %1258 = vmatpush1.msra.mxu0 0.0
        %1259 = vmatprep.subr.mxu0 0.0
        %1260 = vmatpush1.msra.mxu0 0.0
        %1261 = vmatprep.subr.mxu0 0.0
        %1262 = vmatpush1.msra.mxu0 0.0
        %1263 = vmatprep.subr.mxu0 0.0
        %1264 = vmatpush1.msra.mxu0 0.0
        %1265 = vmatprep.subr.mxu0 0.0
        %1266 = vmatpush1.msra.mxu0 0.0
        %1267 = vmatprep.subr.mxu0 0.0
        %1268 = vmatpush1.msra.mxu0 0.0
        %1269 = vmatprep.subr.mxu0 0.0
        %1270 = vmatpush1.msra.mxu0 0.0
        %1271 = vmatprep.subr.mxu0 0.0
        %1272 = vmatpush1.msra.mxu0 0.0
        %1273 = vmatprep.subr.mxu0 0.0
        %1274 = vmatpush1.msra.mxu0 0.0
        %1275 = vmatprep.subr.mxu0 0.0
        %1276 = vmatpush1.msra.mxu0 0.0
        %1277 = vmatprep.subr.mxu0 0.0
        %1278 = vmatpush1.msra.mxu0 0.0
        %1279 = vmatprep.subr.mxu0 0.0
        %1280 = vmatpush1.msra.mxu0 0.0
        %1281 = vmatprep.subr.mxu0 0.0
        %1282 = vmatpush1.msra.mxu0 0.0
        %1283 = vmatprep.subr.mxu0 0.0
        %1284 = vmatpush1.msra.mxu0 0.0
        %1285 = vmatprep.subr.mxu0 %v1253
        %1286 = vmatpush1.msra.mxu0 %v1251
        %1287 = vmatprep.subr.mxu0 %v1238
        %1288 = vmatpush1.msra.mxu0 %v1237
        %1289 = vmatprep.subr.mxu0 0.0
        %1290 = vmatpush2.msra.mxu0 0.0
        %1291 = vmatprep.subr.mxu0 0.0
        %1292 = vmatpush2.msra.mxu0 0.0
        %1293 = vmatprep.subr.mxu0 0.0
        %1294 = vmatpush2.msra.mxu0 0.0
        %1295 = vmatprep.subr.mxu0 0.0
        %1296 = vmatpush2.msra.mxu0 0.0
        %1297 = vmatprep.subr.mxu0 0.0
        %1298 = vmatpush2.msra.mxu0 0.0
        %1299 = vmatprep.subr.mxu0 0.0
        %1300 = vmatpush2.msra.mxu0 0.0
        %1301 = vmatprep.subr.mxu0 0.0
        %1302 = vmatpush2.msra.mxu0 0.0
        %1303 = vmatprep.subr.mxu0 0.0
        %1304 = vmatpush2.msra.mxu0 0.0
        %1305 = vmatprep.subr.mxu0 0.0
        %1306 = vmatpush2.msra.mxu0 0.0
        %1307 = vmatprep.subr.mxu0 0.0
        %1308 = vmatpush2.msra.mxu0 0.0
        %1309 = vmatprep.subr.mxu0 0.0
        %1310 = vmatpush2.msra.mxu0 0.0
        %1311 = vmatprep.subr.mxu0 0.0
        %1312 = vmatpush2.msra.mxu0 0.0
        %1313 = vmatprep.subr.mxu0 0.0
        %1314 = vmatpush2.msra.mxu0 0.0
        %1315 = vmatprep.subr.mxu0 0.0
        %1316 = vmatpush2.msra.mxu0 0.0
        %1317 = vmatprep.subr.mxu0 0.0
        %1318 = vmatpush2.msra.mxu0 0.0
        %1319 = vmatprep.subr.mxu0 0.0
        %1320 = vmatpush2.msra.mxu0 0.0
        %1321 = vmatprep.mubr.f32.mxu0 0.0
        %1322 = vmatmul.mubr.f32.gmra.mxu0 %v1249
        %v1323 = vpop.f32.mrf.mxu0
        %v1324 = vadd.f32 %v1245, %v1323
        %v1325 = vpop.f32.mrf.mxu0
        %v1326 = vadd.f32 %v1245, %v1325
        %1327 = vdwg.mxu0
        %1328 = vmatprep.subr.mxu0 0.0
        %1329 = vmatpush1.msra.mxu0 0.0
        %1330 = vmatprep.subr.mxu0 0.0
        %1331 = vmatpush1.msra.mxu0 0.0
        %1332 = vmatprep.subr.mxu0 0.0
        %1333 = vmatpush1.msra.mxu0 0.0
        %1334 = vmatprep.subr.mxu0 0.0
        %1335 = vmatpush1.msra.mxu0 0.0
        %1336 = vmatprep.subr.mxu0 0.0
        %1337 = vmatpush1.msra.mxu0 0.0
        %1338 = vmatprep.subr.mxu0 0.0
        %1339 = vmatpush1.msra.mxu0 0.0
        %1340 = vmatprep.subr.mxu0 0.0
        %1341 = vmatpush1.msra.mxu0 0.0
        %1342 = vmatprep.subr.mxu0 0.0
        %1343 = vmatpush1.msra.mxu0 0.0
        %1344 = vmatprep.subr.mxu0 0.0
        %1345 = vmatpush1.msra.mxu0 0.0
        %1346 = vmatprep.subr.mxu0 0.0
        %1347 = vmatpush1.msra.mxu0 0.0
        %1348 = vmatprep.subr.mxu0 0.0
        %1349 = vmatpush1.msra.mxu0 0.0
        %1350 = vmatprep.subr.mxu0 0.0
        %1351 = vmatpush1.msra.mxu0 0.0
        %1352 = vmatprep.subr.mxu0 0.0
        %1353 = vmatpush1.msra.mxu0 0.0
        %1354 = vmatprep.subr.mxu0 0.0
        %1355 = vmatpush1.msra.mxu0 0.0
        %1356 = vmatprep.subr.mxu0 0.0
        %1357 = vmatpush1.msra.mxu0 %v1255
        %1358 = vmatprep.subr.mxu0 0.0
        %1359 = vmatpush1.msra.mxu0 %v1239
        %1360 = vmatprep.subr.mxu0 0.0
        %1361 = vmatpush2.msra.mxu0 0.0
        %1362 = vmatprep.subr.mxu0 0.0
        %1363 = vmatpush2.msra.mxu0 0.0
        %1364 = vmatprep.subr.mxu0 0.0
        %1365 = vmatpush2.msra.mxu0 0.0
        %1366 = vmatprep.subr.mxu0 0.0
        %1367 = vmatpush2.msra.mxu0 0.0
        %1368 = vmatprep.subr.mxu0 0.0
        %1369 = vmatpush2.msra.mxu0 0.0
        %1370 = vmatprep.subr.mxu0 0.0
        %1371 = vmatpush2.msra.mxu0 0.0
        %1372 = vmatprep.subr.mxu0 0.0
        %1373 = vmatpush2.msra.mxu0 0.0
        %1374 = vmatprep.subr.mxu0 0.0
        %1375 = vmatpush2.msra.mxu0 0.0
        %1376 = vmatprep.subr.mxu0 0.0
        %1377 = vmatpush2.msra.mxu0 0.0
        %1378 = vmatprep.subr.mxu0 0.0
        %1379 = vmatpush2.msra.mxu0 0.0
        %1380 = vmatprep.subr.mxu0 0.0
        %1381 = vmatpush2.msra.mxu0 0.0
        %1382 = vmatprep.subr.mxu0 0.0
        %1383 = vmatpush2.msra.mxu0 0.0
        %1384 = vmatprep.subr.mxu0 0.0
        %1385 = vmatpush2.msra.mxu0 0.0
        %1386 = vmatprep.subr.mxu0 0.0
        %1387 = vmatpush2.msra.mxu0 0.0
        %1388 = vmatprep.subr.mxu0 0.0
        %1389 = vmatpush2.msra.mxu0 0.0
        %1390 = vmatprep.subr.mxu0 0.0
        %1391 = vmatpush2.msra.mxu0 0.0
        %1392 = vmatprep.mubr.f32.mxu0 0.0
        %1393 = vmatmul.mubr.f32.gmra.mxu0 %v1249
        %v1394 = vpop.f32.mrf.mxu0
        %v1395 = vadd.f32 %v1245, %v1394
        %v1396 = vpop.f32.mrf.mxu0
        %1397 = vdwg.mxu0
        %v1398 = vsub.f32 0.0, %v1324
        %v1399 = vsub.f32 0.0, %v1326
        %v1400 = vsub.f32 0.0, %v1395
        %v1401 = vmul.f32 %v1398, 1.442695
        %v1402 = vpow.pop %v1401
        %v1403 = vmul.f32 %v1399, 1.442695
        %v1404 = vpow.pop %v1403
        %v1405 = vmul.f32 %v1400, 1.442695
        %v1406 = vpow.pop %v1405
        %v1407 = vadd.f32 %v1402, 1.0
        %v1408 = vadd.f32 %v1404, 1.0
        %v1409 = vadd.f32 %v1406, 1.0
        %v1410 = vrcp.pop %v1407
        %v1411 = vrcp.pop %v1408
        %v1412 = vrcp.pop %v1409
        %v1413 = vmul.f32 %v1324, %v1410
        %v1414 = vmul.f32 %v1326, %v1411
        %v1415 = vmul.f32 %v1395, %v1412
        %1416 = vst [vmem:[%s365] sm:$0xff] %v1413
        %1417 = vst [vmem:[%s365 + $0x8] sm:$0xff] %v1414
        %1418 = vst [vmem:[%s365 + $0x10] sm:$0xff] %v1415
        %s1419 = sand.u32 %s248, 1
        %s1420 = scalar_lea.sflag [#allocation4], %s1419
        %s1421 = sand.u32 %s248, 1
        %s1422 = smul.addr %s1421, 24
        %s1423 = scalar_lea.vmem [#allocation5], %s1422
        // Predicated region
        $region65: #{tpu_custom_call.1} parent=59 // pred_check
          %p1424 = pneg %p258
        $region66: #{tpu_custom_call.1} parent=59 // pred_check_branch
          %1426 = sbr.rel (%p1424) target = $region68
        $region67: #{tpu_custom_call.1} parent=59 // pred_region
          %s1428 = ssub.s32 384, 384
          %1429 = vsyncadd %s1420, %s1428
          %s1430 = smul.addr %s25, 3
          %s1431 = smul.addr %s1430, 128
          %s1432 = scalar_lea.hbm %s10, %s1431
          %s1434 = sshll.u32 %s1423, 4
          %s1435 = int_to_ptr.vmem [resolvable:$true] %s1434
          %1437 = dma.vmem_to_hbm [thread:$0]  %s1435, 384, %s1432, %s1420
        $region68: #{tpu_custom_call.1} parent=59 // pred_fallthru
          _
      $region60: #{tpu_custom_call.1} parent=5 // pred_fallthru
        _
      %p1438 = scmp.le.s32.totalorder 2, %s20
      // Predicated region
      $region69: #{tpu_custom_call.1} parent=5 // pred_check
        %p1439 = pneg %p1438
      $region70: #{tpu_custom_call.1} parent=5 // pred_check_branch
        %1441 = sbr.rel (%p1439) target = $region72
      $region71: #{tpu_custom_call.1} parent=5 // pred_region
        %s1442 = ssub.s32 %s20, 2
        // Predicated region
        $region73: #{tpu_custom_call.1} parent=71 // pred_check
          %p1443 = pneg %p264
        $region74: #{tpu_custom_call.1} parent=71 // pred_check_branch
          %1445 = sbr.rel (%p1443) target = $region76
        $region75: #{tpu_custom_call.1} parent=71 // pred_region
          %s1446 = sand.u32 %s249, 1
          %s1447 = scalar_lea.sflag [#allocation4], %s1446
          %s1448 = sand.u32 %s249, 1
          %s1449 = smul.addr %s1448, 24
          %s1450 = scalar_lea.vmem [#allocation5], %s1449
          %1451 = dma.done %s1447, 384
        $region76: #{tpu_custom_call.1} parent=71 // pred_fallthru
          _
      $region72: #{tpu_custom_call.1} parent=5 // pred_fallthru
        _
    $region6: #{tpu_custom_call.1} parent=1 // loop_footer
      %s24 = sadd.s32 1, %s20
    $region7: #{tpu_custom_call.1} parent=1 // loop_footer_branch
      %19 = sbr.rel target = $region3
    $region8: #{tpu_custom_call.1} parent=1 // loop_exit
      _
    %1452 = vsyncpa [#allocation3], 1
    %s1453 = scalar_lea.sflag [#allocation3], 1
    %1454 = vsyncpa %s1453, 1
    %1455 = vsyncpa [#allocation4], 1
    %s1456 = scalar_lea.sflag [#allocation4], 1
    %1457 = vsyncpa %s1456, 1

</llo_original>
